<compile_context>
chip_gen: v5e
topology: v5e:2x2
jax: 0.10.0
libtpu: 0.0.40
codegen_flags: <defaults>
</compile_context>

<pallas_src>
import functools

import jax
import jax.numpy as jnp
from jax.experimental import pallas as pl
from jax.experimental.pallas import tpu as pltpu

NEG_SLOPE = 0.1        # nn.LeakyReLU(negative_slope=0.1)
PAIRNORM_EPS = 1e-5    # PyG PairNorm default eps
LANE = 128             # TPU lane width
NODE_TILE = 512        # node rows per conv grid step (multiple of 16)
EDGE_TILE = 256        # edges per edge-MLP grid step (multiple of 16)
VMEM_LIMIT = 32 * 1024 * 1024   # explicit scoped-VMEM budget (safe on v5e/v6e/v7x)


def _leaky(h):
    return jnp.where(h > 0, h, NEG_SLOPE * h)


def _round_up(v, m):
    return ((v + m - 1) // m) * m


def _pad2(a, rows, cols):
    return jnp.pad(a, ((0, rows - a.shape[0]), (0, cols - a.shape[1])))


# ---------------------------------------------------------------------------
# Kernel A: one SAGEConv(mean) layer matmul pass.
#   z = [agg | x] @ [W_l; W_r] + b  (single K=2*C bf16 MXU matmul, f32 accum)
#   writes z (f32) and accumulates PairNorm stats (per-channel sum and per-channel
#   sum-of-squares over the *valid* node rows) into small resident output blocks.
# ---------------------------------------------------------------------------
def conv_matmul_kernel(n_true, tile_n, xcat_ref, w_ref, b_ref,
                       z_ref, s1_ref, s2_ref):
    t = pl.program_id(0)

    @pl.when(t == 0)
    def _init():
        s1_ref[...] = jnp.zeros_like(s1_ref)
        s2_ref[...] = jnp.zeros_like(s2_ref)

    z = jnp.dot(xcat_ref[...], w_ref[...],
                preferred_element_type=jnp.float32) + b_ref[...]
    z_ref[...] = z

    # Mask node rows that are padding (row id >= true node count) out of the stats.
    row = t * tile_n + jax.lax.broadcasted_iota(jnp.int32, z.shape, 0)
    zm = jnp.where(row < n_true, z, 0.0)
    s1_ref[...] += jnp.sum(zm, axis=0, keepdims=True)        # per-channel sum
    s2_ref[...] += jnp.sum(zm * zm, axis=0, keepdims=True)   # per-channel sum of squares


def run_conv_matmul(xcat, w_stack, b, n_true, tile_n):
    n_pad, k = xcat.shape
    c_out = w_stack.shape[1]
    n_tiles = n_pad // tile_n

    flops = 2 * n_pad * k * c_out
    bytes_accessed = (n_pad * k * 2          # xcat (bf16)
                      + k * c_out * 2        # stacked weight (bf16)
                      + c_out * 4            # bias
                      + n_pad * c_out * 4    # z out (f32)
                      + 2 * c_out * 4)       # stats out

    return pl.pallas_call(
        functools.partial(conv_matmul_kernel, n_true, tile_n),
        out_shape=(jax.ShapeDtypeStruct((n_pad, c_out), jnp.float32),
                   jax.ShapeDtypeStruct((1, c_out), jnp.float32),
                   jax.ShapeDtypeStruct((1, c_out), jnp.float32)),
        grid_spec=pltpu.PrefetchScalarGridSpec(
            num_scalar_prefetch=0,
            grid=(n_tiles,),
            in_specs=[
                pl.BlockSpec((tile_n, k), lambda t: (t, 0)),     # [agg | x] tile (bf16)
                pl.BlockSpec((k, c_out), lambda t: (0, 0)),      # [W_l; W_r] (resident)
                pl.BlockSpec((1, c_out), lambda t: (0, 0)),      # bias (resident)
            ],
            out_specs=[
                pl.BlockSpec((tile_n, c_out), lambda t: (t, 0)),  # z tile
                pl.BlockSpec((1, c_out), lambda t: (0, 0)),       # sum (accumulator)
                pl.BlockSpec((1, c_out), lambda t: (0, 0)),       # sum of squares (accumulator)
            ],
        ),
        compiler_params=pltpu.CompilerParams(
            # stats accumulate across node tiles -> sequential
            dimension_semantics=("arbitrary",),
            vmem_limit_bytes=VMEM_LIMIT,
        ),
        cost_estimate=pl.CostEstimate(flops=flops, transcendentals=0,
                                      bytes_accessed=bytes_accessed),
    )(xcat, w_stack, b)


# ---------------------------------------------------------------------------
# Kernel B: PairNorm normalize + LeakyReLU, pure elementwise over node tiles.
#   stats row 0 = mu (per-channel mean), row 1 = global rsqrt scale (broadcast).
#   Output in bf16 (next layer / edge MLP consumes bf16 matmul operands anyway).
# ---------------------------------------------------------------------------
def norm_act_kernel(n_true, tile_n, z_ref, stats_ref, o_ref):
    t = pl.program_id(0)
    st = stats_ref[...]
    mu = st[0:1, :]
    sc = st[1:2, :]
    h = _leaky((z_ref[...] - mu) * sc)
    row = t * tile_n + jax.lax.broadcasted_iota(jnp.int32, h.shape, 0)
    o_ref[...] = jnp.where(row < n_true, h, 0.0).astype(o_ref.dtype)


def run_norm_act(z, stats, n_true, tile_n):
    n_pad, c = z.shape
    n_tiles = n_pad // tile_n
    bytes_accessed = n_pad * c * 4 + 2 * c * 4 + n_pad * c * 2
    return pl.pallas_call(
        functools.partial(norm_act_kernel, n_true, tile_n),
        out_shape=jax.ShapeDtypeStruct((n_pad, c), jnp.bfloat16),
        grid_spec=pltpu.PrefetchScalarGridSpec(
            num_scalar_prefetch=0,
            grid=(n_tiles,),
            in_specs=[pl.BlockSpec((tile_n, c), lambda t: (t, 0)),
                      pl.BlockSpec((2, c), lambda t: (0, 0))],
            out_specs=pl.BlockSpec((tile_n, c), lambda t: (t, 0)),
        ),
        compiler_params=pltpu.CompilerParams(
            dimension_semantics=("parallel",),       # node tiles independent
            vmem_limit_bytes=VMEM_LIMIT,
        ),
        cost_estimate=pl.CostEstimate(flops=4 * n_pad * c, transcendentals=0,
                                      bytes_accessed=bytes_accessed),
    )(z, stats)


# ---------------------------------------------------------------------------
# Kernel C: edge MLP head, one tile of edges per grid step.
#   The wrapper streams a lane-dense (E_pad, 2*C_pad) bf16 [h_src | h_dst] slab;
#   the first FC weight is stacked to match, so the first matmul is K=2*C.
#   All weights/biases are VMEM-resident (constant index maps).
# ---------------------------------------------------------------------------
def edge_mlp_kernel(num_fc, ecat_ref, *rest):
    *w_refs, o_ref = rest
    h = ecat_ref[...]
    idx = 0
    for _ in range(num_fc):
        w, b = w_refs[idx], w_refs[idx + 1]
        idx += 2
        h = _leaky(jnp.dot(h.astype(jnp.bfloat16), w[...],
                           preferred_element_type=jnp.float32) + b[...])
    wo, bo = w_refs[idx], w_refs[idx + 1]
    o_ref[...] = jnp.dot(h.astype(jnp.bfloat16), wo[...],
                         preferred_element_type=jnp.float32) + bo[...]


def run_edge_mlp(ecat, edge_weights, num_fc, out_pad, edge_tile):
    e_pad, k = ecat.shape
    n_tiles = e_pad // edge_tile

    mm_flops = 0
    w_bytes = 0
    for w in edge_weights:
        if w.ndim == 2 and w.shape[0] > 1:
            mm_flops += 2 * e_pad * w.shape[0] * w.shape[1]
        w_bytes += int(w.size) * w.dtype.itemsize
    # TODO(synk): output is (E_pad, 128) f32 with only out_channels useful columns;
    # lane padding is unavoidable, kept f32 to preserve the module's output dtype.
    bytes_accessed = e_pad * k * 2 + w_bytes + e_pad * out_pad * 4

    return pl.pallas_call(
        functools.partial(edge_mlp_kernel, num_fc),
        out_shape=jax.ShapeDtypeStruct((e_pad, out_pad), jnp.float32),
        grid_spec=pltpu.PrefetchScalarGridSpec(
            num_scalar_prefetch=0,
            grid=(n_tiles,),
            in_specs=[pl.BlockSpec((edge_tile, k), lambda g: (g, 0))]
                     + [pl.BlockSpec(w.shape, lambda g: (0, 0)) for w in edge_weights],
            out_specs=pl.BlockSpec((edge_tile, out_pad), lambda g: (g, 0)),
        ),
        compiler_params=pltpu.CompilerParams(
            dimension_semantics=("parallel",),      # edge tiles independent
            vmem_limit_bytes=VMEM_LIMIT,
        ),
        cost_estimate=pl.CostEstimate(flops=mm_flops, transcendentals=0,
                                      bytes_accessed=bytes_accessed),
    )(ecat, *edge_weights)


# ---------------------------------------------------------------------------
# Parameter preparation: zero-pad to lane-dense shapes, stack the K-fused
# weights, bf16 matmul weights, f32 biases.  Padding is exact: padded channel
# columns stay identically zero through every layer.
# ---------------------------------------------------------------------------
def prepare_params(params, in_channels, out_channels):
    conv_prepped = []
    c_prev = in_channels
    for (wl, bl, wr) in params["conv"]:
        c_out = wl.shape[1]
        cp_in = _round_up(c_prev, LANE)
        cp_out = _round_up(c_out, LANE)
        # stacked weight for z = [agg | x] @ [W_l; W_r] + b
        w_stack = jnp.zeros((2 * cp_in, cp_out), jnp.float32)
        w_stack = w_stack.at[:c_prev, :c_out].set(wl)
        w_stack = w_stack.at[cp_in:cp_in + c_prev, :c_out].set(wr)
        conv_prepped.append((w_stack.astype(jnp.bfloat16),
                             _pad2(bl, 1, cp_out).astype(jnp.float32)))
        c_prev = c_out

    # edge MLP: first FC weight acts on cat([h_src, h_dst]); align its rows with
    # the padded concatenation [h_src (C_pad) | h_dst (C_pad)].
    c_conv = c_prev
    cp_conv = _round_up(c_conv, LANE)
    w0, b0 = params["fc"][0]
    f0 = w0.shape[1]
    fp_prev = _round_up(f0, LANE)
    w0_stack = jnp.zeros((2 * cp_conv, fp_prev), jnp.float32)
    w0_stack = w0_stack.at[:c_conv, :f0].set(w0[:c_conv])
    w0_stack = w0_stack.at[cp_conv:cp_conv + c_conv, :f0].set(w0[c_conv:])
    edge_weights = [w0_stack.astype(jnp.bfloat16),
                    _pad2(b0, 1, fp_prev).astype(jnp.float32)]
    for (w, b) in params["fc"][1:]:
        fp = _round_up(w.shape[1], LANE)
        edge_weights += [_pad2(w, fp_prev, fp).astype(jnp.bfloat16),
                         _pad2(b, 1, fp).astype(jnp.float32)]
        fp_prev = fp

    wo, bo = params["fc_out"]
    out_pad = _round_up(out_channels, LANE)
    edge_weights += [_pad2(wo, fp_prev, out_pad).astype(jnp.bfloat16),
                     _pad2(bo, 1, out_pad).astype(jnp.float32)]
    return conv_prepped, edge_weights, out_pad


# ---------------------------------------------------------------------------
# Full forward (prod_mode=False, rescon_mode=False, heads=1).
# data.edge_attr is unused by the reference forward in this configuration.
# ---------------------------------------------------------------------------
def edge_attr_predictor_forward(x, edge_index, params, out_channels):
    n, c_in = x.shape
    e = edge_index.shape[1]
    src = edge_index[0].astype(jnp.int32)
    dst = edge_index[1].astype(jnp.int32)

    conv_prepped, edge_weights, out_pad = prepare_params(params, c_in, out_channels)

    node_tile = min(NODE_TILE, _round_up(n, 16))
    n_pad = _round_up(n, node_tile)
    edge_tile = min(EDGE_TILE, _round_up(e, 16))
    e_pad = _round_up(e, edge_tile)

    # node features, zero-padded to (n_pad, 128*k), stored bf16
    c_pad = _round_up(c_in, LANE)
    h = jnp.zeros((n_pad, c_pad), jnp.bfloat16).at[:n, :c_in].set(
        x.astype(jnp.bfloat16))

    # SAGE 'mean' aggregation: messages flow src -> dst, averaged at dst.
    deg = jax.ops.segment_sum(jnp.ones((e,), jnp.float32), dst, num_segments=n_pad)
    inv_deg = (1.0 / jnp.maximum(deg, 1.0))[:, None]

    for (w_stack, bl) in conv_prepped:
        # TODO(synk): the scatter-add half of the 'mean' aggregation stays in XLA
        # (jax.ops.segment_sum); an efficient in-kernel scatter-add has no clean
        # Pallas TPU equivalent.  Gather reads the bf16 node table; accumulate in f32.
        gathered = jnp.take(h, src, axis=0).astype(jnp.float32)
        agg = jax.ops.segment_sum(gathered, dst, num_segments=n_pad) * inv_deg
        xcat = jnp.concatenate([agg.astype(jnp.bfloat16), h], axis=1)

        z, s1, s2 = run_conv_matmul(xcat, w_stack, bl, n, node_tile)

        # PairNorm statistics (on true nodes only): mu, rsqrt(eps + mean ||z-mu||^2)
        c_out = z.shape[1]
        mu = s1 / float(n)
        var = jnp.maximum(jnp.sum(s2) / float(n) - jnp.sum(mu * mu), 0.0)
        scale = jax.lax.rsqrt(PAIRNORM_EPS + var)
        stats = jnp.concatenate(
            [mu, jnp.full((1, c_out), 1.0, jnp.float32) * scale], axis=0)

        h = run_norm_act(z, stats, n, node_tile)

    # Edge features: lane-dense bf16 [h_src | h_dst]; padded edge slots gather node 0
    # (their outputs are sliced away below).
    src_pad = jnp.zeros((e_pad,), jnp.int32).at[:e].set(src)
    dst_pad = jnp.zeros((e_pad,), jnp.int32).at[:e].set(dst)
    ecat = jnp.concatenate([jnp.take(h, src_pad, axis=0),
                            jnp.take(h, dst_pad, axis=0)], axis=1)

    out = run_edge_mlp(ecat, edge_weights, len(params["fc"]), out_pad, edge_tile)
    return out[:e, :out_channels]


# ---------------------------------------------------------------------------
# Pure-JAX reference (matmul operands rounded to bf16 to mirror the MXU path).
# ---------------------------------------------------------------------------
def _bf16(a):
    return a.astype(jnp.bfloat16).astype(jnp.float32)


def reference_forward(x, edge_index, params, out_channels):
    n = x.shape[0]
    src, dst = edge_index[0], edge_index[1]
    deg = jax.ops.segment_sum(jnp.ones((src.shape[0],), jnp.float32), dst, num_segments=n)
    inv_deg = (1.0 / jnp.maximum(deg, 1.0))[:, None]

    h = x
    for (wl, bl, wr) in params["conv"]:
        agg = jax.ops.segment_sum(h[src], dst, num_segments=n) * inv_deg
        z = _bf16(agg) @ _bf16(wl) + bl + _bf16(h) @ _bf16(wr)
        z = z - jnp.mean(z, axis=0, keepdims=True)
        z = z / jnp.sqrt(PAIRNORM_EPS + jnp.mean(jnp.sum(z * z, axis=-1)))
        h = _leaky(z)

    eattr = jnp.concatenate([h[src], h[dst]], axis=-1)
    for (w, b) in params["fc"]:
        eattr = _leaky(_bf16(eattr) @ _bf16(w) + b)
    wo, bo = params["fc_out"]
    return _bf16(eattr) @ _bf16(wo) + bo


# ---------------------------------------------------------------------------
# Deterministic parameter construction (true, unpadded shapes)
# ---------------------------------------------------------------------------
def init_params(key, in_channels, out_channels, fc_channels, conv_channels):
    params = {"conv": [], "fc": []}
    heads = 1
    in_c = in_channels
    for c_out in conv_channels:
        key, k1, k2, k3 = jax.random.split(key, 4)
        wl = 0.1 * jax.random.normal(k1, (in_c, c_out), jnp.float32)
        bl = 0.1 * jax.random.normal(k2, (1, c_out), jnp.float32)
        wr = 0.1 * jax.random.normal(k3, (in_c, c_out), jnp.float32)   # lin_r: no bias
        params["conv"].append((wl, bl, wr))
        in_c = c_out * heads

    prev = 2 * conv_channels[-1] * heads   # prod_mode=False
    for f in fc_channels:
        key, k1, k2 = jax.random.split(key, 3)
        w = 0.1 * jax.random.normal(k1, (prev, f), jnp.float32)
        b = 0.1 * jax.random.normal(k2, (1, f), jnp.float32)
        params["fc"].append((w, b))
        prev = f

    key, k1, k2 = jax.random.split(key, 3)
    wo = 0.1 * jax.random.normal(k1, (prev, out_channels), jnp.float32)
    bo = 0.1 * jax.random.normal(k2, (1, out_channels), jnp.float32)
    params["fc_out"] = (wo, bo)
    return params


if __name__ == "__main__":
    # small synthetic graph (N not a tile multiple -> exercises PairNorm masking;
    # multiple edge tiles -> exercises the edge grid)
    N = 110
    E = 300
    IN_CHANNELS = 12
    OUT_CHANNELS = 5
    CONV_CHANNELS = [24, 24]
    FC_CHANNELS = [40, 24]

    key = jax.random.PRNGKey(0)
    key, kx, ks, kd, kp = jax.random.split(key, 5)
    x = jax.random.normal(kx, (N, IN_CHANNELS), jnp.float32)
    src = jax.random.randint(ks, (E,), 0, N)
    dst = jax.random.randint(kd, (E,), 0, N)
    edge_index = jnp.stack([src, dst], axis=0)   # (2, E)

    params = init_params(kp, IN_CHANNELS, OUT_CHANNELS, FC_CHANNELS, CONV_CHANNELS)

    fwd = jax.jit(functools.partial(edge_attr_predictor_forward,
                                    out_channels=OUT_CHANNELS))
    out = jax.block_until_ready(fwd(x, edge_index, params))

    ref = jax.block_until_ready(reference_forward(x, edge_index, params, OUT_CHANNELS))

    assert out.shape == (E, OUT_CHANNELS)
    max_err = float(jnp.max(jnp.abs(out - ref)))
    assert jnp.allclose(out, ref, atol=2e-2, rtol=2e-2), (
        f"mismatch vs pure-JAX reference (max abs err {max_err})")

    print("KERNEL_OK")
</pallas_src>

<mosaic_0001>
module attributes {stable_mosaic.version = 11 : i64} {
  func.func @norm_act_kernel(%arg0: i32, %arg1: memref<112x128xf32, #tpu.memory_space<vmem>>, %arg2: memref<2x128xf32, #tpu.memory_space<vmem>>, %arg3: memref<112x128xbf16, #tpu.memory_space<vmem>>) attributes {dimension_semantics = [#tpu.dimension_semantics<parallel>], iteration_bounds = array<i64: 1>, scalar_prefetch = 0 : i64, scratch_operands = 0 : i64, tpu.core_type = #tpu.core_type<tc>, window_params = [{transform_indices = @transform_0, window_bounds = array<i64: 112, 128>}, {pipeline_mode = #tpu.pipeline_mode<synchronous>, transform_indices = @transform_1, window_bounds = array<i64: 2, 128>}, {transform_indices = @transform_2, window_bounds = array<i64: 112, 128>}]} {
    %c0 = arith.constant 0 : index
    %c0_0 = arith.constant 0 : index
    %0 = vector.load %arg2[%c0, %c0_0] : memref<2x128xf32, #tpu.memory_space<vmem>>, vector<2x128xf32>
    %1 = vector.extract_strided_slice %0 {offsets = [0, 0], sizes = [1, 128], strides = [1, 1]} : vector<2x128xf32> to vector<1x128xf32>
    %2 = vector.extract_strided_slice %0 {offsets = [1, 0], sizes = [1, 128], strides = [1, 1]} : vector<2x128xf32> to vector<1x128xf32>
    %c0_1 = arith.constant 0 : index
    %c0_2 = arith.constant 0 : index
    %3 = vector.load %arg1[%c0_1, %c0_2] : memref<112x128xf32, #tpu.memory_space<vmem>>, vector<112x128xf32>
    %4 = vector.broadcast %1 : vector<1x128xf32> to vector<112x128xf32>
    %5 = arith.subf %3, %4 : vector<112x128xf32>
    %6 = vector.broadcast %2 : vector<1x128xf32> to vector<112x128xf32>
    %7 = arith.mulf %5, %6 : vector<112x128xf32>
    %cst = arith.constant 0.000000e+00 : f32
    %8 = vector.broadcast %cst : f32 to vector<112x128xf32>
    %9 = arith.cmpf ogt, %7, %8 : vector<112x128xf32>
    %cst_3 = arith.constant 1.000000e-01 : f32
    %10 = vector.broadcast %cst_3 : f32 to vector<112x128xf32>
    %11 = arith.mulf %10, %7 : vector<112x128xf32>
    %12 = arith.select %9, %7, %11 : vector<112x128xi1>, vector<112x128xf32>
    %c112_i32 = arith.constant 112 : i32
    %13 = arith.muli %arg0, %c112_i32 : i32
    %14 = tpu.iota {dimensions = array<i32: 0>} : vector<112x128xi32>
    %15 = vector.broadcast %13 : i32 to vector<112x128xi32>
    %16 = arith.addi %15, %14 : vector<112x128xi32>
    %c110_i32 = arith.constant 110 : i32
    %17 = vector.broadcast %c110_i32 : i32 to vector<112x128xi32>
    %18 = arith.cmpi slt, %16, %17 : vector<112x128xi32>
    %cst_4 = arith.constant 0.000000e+00 : f32
    %19 = vector.broadcast %cst_4 : f32 to vector<112x128xf32>
    %20 = arith.select %18, %12, %19 : vector<112x128xi1>, vector<112x128xf32>
    %21 = arith.truncf %20 : vector<112x128xf32> to vector<112x128xbf16>
    %c0_5 = arith.constant 0 : index
    %c0_6 = arith.constant 0 : index
    %22 = vector.load %arg3[%c0_5, %c0_6] : memref<112x128xbf16, #tpu.memory_space<vmem>>, vector<112x128xbf16>
    tpu.vector_store %arg3[%c0_5, %c0_6], %21 {strides = array<i32>} : memref<112x128xbf16, #tpu.memory_space<vmem>>, vector<112x128xbf16>,
    return
  }
  func.func @transform_0(%arg0: i32) -> (i32, i32) {
    %c0_i32 = arith.constant 0 : i32
    %c0_i32_0 = arith.constant 0 : i32
    return %arg0, %c0_i32 : i32, i32
  }
  func.func @transform_1(%arg0: i32) -> (i32, i32) {
    %c0_i32 = arith.constant 0 : i32
    %c0_i32_0 = arith.constant 0 : i32
    %c0_i32_1 = arith.constant 0 : i32
    return %c0_i32, %c0_i32_0 : i32, i32
  }
  func.func @transform_2(%arg0: i32) -> (i32, i32) {
    %c0_i32 = arith.constant 0 : i32
    %c0_i32_0 = arith.constant 0 : i32
    return %arg0, %c0_i32 : i32, i32
  }
}

module attributes {stable_mosaic.version = 11 : i64} {
  func.func @conv_matmul_kernel(%arg0: i32, %arg1: memref<112x256xbf16, #tpu.memory_space<vmem>>, %arg2: memref<256x128xbf16, #tpu.memory_space<vmem>>, %arg3: memref<1x128xf32, #tpu.memory_space<vmem>>, %arg4: memref<112x128xf32, #tpu.memory_space<vmem>>, %arg5: memref<1x128xf32, #tpu.memory_space<vmem>>, %arg6: memref<1x128xf32, #tpu.memory_space<vmem>>) attributes {dimension_semantics = [#tpu.dimension_semantics<arbitrary>], iteration_bounds = array<i64: 1>, scalar_prefetch = 0 : i64, scratch_operands = 0 : i64, tpu.core_type = #tpu.core_type<tc>, window_params = [{transform_indices = @transform_0, window_bounds = array<i64: 112, 256>}, {pipeline_mode = #tpu.pipeline_mode<synchronous>, transform_indices = @transform_1, window_bounds = array<i64: 256, 128>}, {pipeline_mode = #tpu.pipeline_mode<synchronous>, transform_indices = @transform_2, window_bounds = array<i64: 1, 128>}, {transform_indices = @transform_3, window_bounds = array<i64: 112, 128>}, {pipeline_mode = #tpu.pipeline_mode<synchronous>, transform_indices = @transform_4, window_bounds = array<i64: 1, 128>}, {pipeline_mode = #tpu.pipeline_mode<synchronous>, transform_indices = @transform_5, window_bounds = array<i64: 1, 128>}]} {
    %c0_i32 = arith.constant 0 : i32
    %0 = arith.cmpi eq, %arg0, %c0_i32 : i32
    %1 = arith.extui %0 : i1 to i32
    %c0_i32_0 = arith.constant 0 : i32
    %2 = arith.cmpi ne, %1, %c0_i32_0 : i32
    scf.if %2 {
      %cst_19 = arith.constant 0.000000e+00 : f32
      %29 = vector.broadcast %cst_19 : f32 to vector<1x128xf32>
      %c0_20 = arith.constant 0 : index
      %c0_21 = arith.constant 0 : index
      %30 = vector.load %arg5[%c0_20, %c0_21] : memref<1x128xf32, #tpu.memory_space<vmem>>, vector<1x128xf32>
      tpu.vector_store %arg5[%c0_20, %c0_21], %29 {strides = array<i32>} : memref<1x128xf32, #tpu.memory_space<vmem>>, vector<1x128xf32>,
      %cst_22 = arith.constant 0.000000e+00 : f32
      %31 = vector.broadcast %cst_22 : f32 to vector<1x128xf32>
      %c0_23 = arith.constant 0 : index
      %c0_24 = arith.constant 0 : index
      %32 = vector.load %arg6[%c0_23, %c0_24] : memref<1x128xf32, #tpu.memory_space<vmem>>, vector<1x128xf32>
      tpu.vector_store %arg6[%c0_23, %c0_24], %31 {strides = array<i32>} : memref<1x128xf32, #tpu.memory_space<vmem>>, vector<1x128xf32>,
    } else {
    }
    %c0 = arith.constant 0 : index
    %c0_1 = arith.constant 0 : index
    %3 = vector.load %arg1[%c0, %c0_1] : memref<112x256xbf16, #tpu.memory_space<vmem>>, vector<112x256xbf16>
    %c0_2 = arith.constant 0 : index
    %c0_3 = arith.constant 0 : index
    %4 = vector.load %arg2[%c0_2, %c0_3] : memref<256x128xbf16, #tpu.memory_space<vmem>>, vector<256x128xbf16>
    %cst = arith.constant dense<0.000000e+00> : vector<112x128xf32>
    %5 = tpu.matmul %3, %4, %cst {dimension_numbers = #tpu.dot_dimension_numbers<[1], [0], [0], [1], [0, 0, 1, 1], [], []>} : vector<112x256xbf16>, vector<256x128xbf16>, vector<112x128xf32> -> vector<112x128xf32>
    %c0_4 = arith.constant 0 : index
    %c0_5 = arith.constant 0 : index
    %6 = vector.load %arg3[%c0_4, %c0_5] : memref<1x128xf32, #tpu.memory_space<vmem>>, vector<1x128xf32>
    %7 = vector.broadcast %6 : vector<1x128xf32> to vector<112x128xf32>
    %8 = arith.addf %5, %7 : vector<112x128xf32>
    %c0_6 = arith.constant 0 : index
    %c0_7 = arith.constant 0 : index
    %9 = vector.load %arg4[%c0_6, %c0_7] : memref<112x128xf32, #tpu.memory_space<vmem>>, vector<112x128xf32>
    tpu.vector_store %arg4[%c0_6, %c0_7], %8 {strides = array<i32>} : memref<112x128xf32, #tpu.memory_space<vmem>>, vector<112x128xf32>,
    %c112_i32 = arith.constant 112 : i32
    %10 = arith.muli %arg0, %c112_i32 : i32
    %11 = tpu.iota {dimensions = array<i32: 0>} : vector<112x128xi32>
    %12 = vector.broadcast %10 : i32 to vector<112x128xi32>
    %13 = arith.addi %12, %11 : vector<112x128xi32>
    %c110_i32 = arith.constant 110 : i32
    %14 = vector.broadcast %c110_i32 : i32 to vector<112x128xi32>
    %15 = arith.cmpi slt, %13, %14 : vector<112x128xi32>
    %cst_8 = arith.constant 0.000000e+00 : f32
    %16 = vector.broadcast %cst_8 : f32 to vector<112x128xf32>
    %17 = arith.select %15, %8, %16 : vector<112x128xi1>, vector<112x128xf32>
    %c0_9 = arith.constant 0 : index
    %c0_10 = arith.constant 0 : index
    %18 = vector.load %arg5[%c0_9, %c0_10] : memref<1x128xf32, #tpu.memory_space<vmem>>, vector<1x128xf32>
    %cst_11 = arith.constant dense<0.000000e+00> : vector<128xf32>
    %19 = vector.multi_reduction <add>, %17, %cst_11 [0] : vector<112x128xf32> to vector<128xf32>
    %20 = vector.shape_cast %19 : vector<128xf32> to vector<1x128xf32>
    %21 = arith.addf %18, %20 : vector<1x128xf32>
    %c0_12 = arith.constant 0 : index
    %c0_13 = arith.constant 0 : index
    %22 = vector.load %arg5[%c0_12, %c0_13] : memref<1x128xf32, #tpu.memory_space<vmem>>, vector<1x128xf32>
    tpu.vector_store %arg5[%c0_12, %c0_13], %21 {strides = array<i32>} : memref<1x128xf32, #tpu.memory_space<vmem>>, vector<1x128xf32>,
    %c0_14 = arith.constant 0 : index
    %c0_15 = arith.constant 0 : index
    %23 = vector.load %arg6[%c0_14, %c0_15] : memref<1x128xf32, #tpu.memory_space<vmem>>, vector<1x128xf32>
    %24 = arith.mulf %17, %17 : vector<112x128xf32>
    %cst_16 = arith.constant dense<0.000000e+00> : vector<128xf32>
    %25 = vector.multi_reduction <add>, %24, %cst_16 [0] : vector<112x128xf32> to vector<128xf32>
    %26 = vector.shape_cast %25 : vector<128xf32> to vector<1x128xf32>
    %27 = arith.addf %23, %26 : vector<1x128xf32>
    %c0_17 = arith.constant 0 : index
    %c0_18 = arith.constant 0 : index
    %28 = vector.load %arg6[%c0_17, %c0_18] : memref<1x128xf32, #tpu.memory_space<vmem>>, vector<1x128xf32>
    tpu.vector_store %arg6[%c0_17, %c0_18], %27 {strides = array<i32>} : memref<1x128xf32, #tpu.memory_space<vmem>>, vector<1x128xf32>,
    return
  }
  func.func @transform_0(%arg0: i32) -> (i32, i32) {
    %c0_i32 = arith.constant 0 : i32
    %c0_i32_0 = arith.constant 0 : i32
    return %arg0, %c0_i32 : i32, i32
  }
  func.func @transform_1(%arg0: i32) -> (i32, i32) {
    %c0_i32 = arith.constant 0 : i32
    %c0_i32_0 = arith.constant 0 : i32
    %c0_i32_1 = arith.constant 0 : i32
    return %c0_i32, %c0_i32_0 : i32, i32
  }
  func.func @transform_2(%arg0: i32) -> (i32, i32) {
    %c0_i32 = arith.constant 0 : i32
    %c0_i32_0 = arith.constant 0 : i32
    %c0_i32_1 = arith.constant 0 : i32
    return %c0_i32, %c0_i32_0 : i32, i32
  }
  func.func @transform_3(%arg0: i32) -> (i32, i32) {
    %c0_i32 = arith.constant 0 : i32
    %c0_i32_0 = arith.constant 0 : i32
    return %arg0, %c0_i32 : i32, i32
  }
  func.func @transform_4(%arg0: i32) -> (i32, i32) {
    %c0_i32 = arith.constant 0 : i32
    %c0_i32_0 = arith.constant 0 : i32
    %c0_i32_1 = arith.constant 0 : i32
    return %c0_i32, %c0_i32_0 : i32, i32
  }
  func.func @transform_5(%arg0: i32) -> (i32, i32) {
    %c0_i32 = arith.constant 0 : i32
    %c0_i32_0 = arith.constant 0 : i32
    %c0_i32_1 = arith.constant 0 : i32
    return %c0_i32, %c0_i32_0 : i32, i32
  }
}

module attributes {stable_mosaic.version = 11 : i64} {
  func.func @edge_mlp_kernel(%arg0: i32, %arg1: memref<256x256xbf16, #tpu.memory_space<vmem>>, %arg2: memref<256x128xbf16, #tpu.memory_space<vmem>>, %arg3: memref<1x128xf32, #tpu.memory_space<vmem>>, %arg4: memref<128x128xbf16, #tpu.memory_space<vmem>>, %arg5: memref<1x128xf32, #tpu.memory_space<vmem>>, %arg6: memref<128x128xbf16, #tpu.memory_space<vmem>>, %arg7: memref<1x128xf32, #tpu.memory_space<vmem>>, %arg8: memref<256x128xf32, #tpu.memory_space<vmem>>) attributes {dimension_semantics = [#tpu.dimension_semantics<parallel>], iteration_bounds = array<i64: 2>, scalar_prefetch = 0 : i64, scratch_operands = 0 : i64, tpu.core_type = #tpu.core_type<tc>, window_params = [{transform_indices = @transform_0, window_bounds = array<i64: 256, 256>}, {pipeline_mode = #tpu.pipeline_mode<synchronous>, transform_indices = @transform_1, window_bounds = array<i64: 256, 128>}, {pipeline_mode = #tpu.pipeline_mode<synchronous>, transform_indices = @transform_2, window_bounds = array<i64: 1, 128>}, {pipeline_mode = #tpu.pipeline_mode<synchronous>, transform_indices = @transform_3, window_bounds = array<i64: 128, 128>}, {pipeline_mode = #tpu.pipeline_mode<synchronous>, transform_indices = @transform_4, window_bounds = array<i64: 1, 128>}, {pipeline_mode = #tpu.pipeline_mode<synchronous>, transform_indices = @transform_5, window_bounds = array<i64: 128, 128>}, {pipeline_mode = #tpu.pipeline_mode<synchronous>, transform_indices = @transform_6, window_bounds = array<i64: 1, 128>}, {transform_indices = @transform_7, window_bounds = array<i64: 256, 128>}]} {
    %c0 = arith.constant 0 : index
    %c0_0 = arith.constant 0 : index
    %0 = vector.load %arg1[%c0, %c0_0] : memref<256x256xbf16, #tpu.memory_space<vmem>>, vector<256x256xbf16>
    %c0_1 = arith.constant 0 : index
    %c0_2 = arith.constant 0 : index
    %1 = vector.load %arg2[%c0_1, %c0_2] : memref<256x128xbf16, #tpu.memory_space<vmem>>, vector<256x128xbf16>
    %cst = arith.constant dense<0.000000e+00> : vector<256x128xf32>
    %2 = tpu.matmul %0, %1, %cst {dimension_numbers = #tpu.dot_dimension_numbers<[1], [0], [0], [1], [0, 0, 1, 1], [], []>} : vector<256x256xbf16>, vector<256x128xbf16>, vector<256x128xf32> -> vector<256x128xf32>
    %c0_3 = arith.constant 0 : index
    %c0_4 = arith.constant 0 : index
    %3 = vector.load %arg3[%c0_3, %c0_4] : memref<1x128xf32, #tpu.memory_space<vmem>>, vector<1x128xf32>
    %4 = vector.broadcast %3 : vector<1x128xf32> to vector<256x128xf32>
    %5 = arith.addf %2, %4 : vector<256x128xf32>
    %cst_5 = arith.constant 0.000000e+00 : f32
    %6 = vector.broadcast %cst_5 : f32 to vector<256x128xf32>
    %7 = arith.cmpf ogt, %5, %6 : vector<256x128xf32>
    %cst_6 = arith.constant 1.000000e-01 : f32
    %8 = vector.broadcast %cst_6 : f32 to vector<256x128xf32>
    %9 = arith.mulf %8, %5 : vector<256x128xf32>
    %10 = arith.select %7, %5, %9 : vector<256x128xi1>, vector<256x128xf32>
    %11 = arith.truncf %10 : vector<256x128xf32> to vector<256x128xbf16>
    %c0_7 = arith.constant 0 : index
    %c0_8 = arith.constant 0 : index
    %12 = vector.load %arg4[%c0_7, %c0_8] : memref<128x128xbf16, #tpu.memory_space<vmem>>, vector<128x128xbf16>
    %cst_9 = arith.constant dense<0.000000e+00> : vector<256x128xf32>
    %13 = tpu.matmul %11, %12, %cst_9 {dimension_numbers = #tpu.dot_dimension_numbers<[1], [0], [0], [1], [0, 0, 1, 1], [], []>} : vector<256x128xbf16>, vector<128x128xbf16>, vector<256x128xf32> -> vector<256x128xf32>
    %c0_10 = arith.constant 0 : index
    %c0_11 = arith.constant 0 : index
    %14 = vector.load %arg5[%c0_10, %c0_11] : memref<1x128xf32, #tpu.memory_space<vmem>>, vector<1x128xf32>
    %15 = vector.broadcast %14 : vector<1x128xf32> to vector<256x128xf32>
    %16 = arith.addf %13, %15 : vector<256x128xf32>
    %cst_12 = arith.constant 0.000000e+00 : f32
    %17 = vector.broadcast %cst_12 : f32 to vector<256x128xf32>
    %18 = arith.cmpf ogt, %16, %17 : vector<256x128xf32>
    %cst_13 = arith.constant 1.000000e-01 : f32
    %19 = vector.broadcast %cst_13 : f32 to vector<256x128xf32>
    %20 = arith.mulf %19, %16 : vector<256x128xf32>
    %21 = arith.select %18, %16, %20 : vector<256x128xi1>, vector<256x128xf32>
    %22 = arith.truncf %21 : vector<256x128xf32> to vector<256x128xbf16>
    %c0_14 = arith.constant 0 : index
    %c0_15 = arith.constant 0 : index
    %23 = vector.load %arg6[%c0_14, %c0_15] : memref<128x128xbf16, #tpu.memory_space<vmem>>, vector<128x128xbf16>
    %cst_16 = arith.constant dense<0.000000e+00> : vector<256x128xf32>
    %24 = tpu.matmul %22, %23, %cst_16 {dimension_numbers = #tpu.dot_dimension_numbers<[1], [0], [0], [1], [0, 0, 1, 1], [], []>} : vector<256x128xbf16>, vector<128x128xbf16>, vector<256x128xf32> -> vector<256x128xf32>
    %c0_17 = arith.constant 0 : index
    %c0_18 = arith.constant 0 : index
    %25 = vector.load %arg7[%c0_17, %c0_18] : memref<1x128xf32, #tpu.memory_space<vmem>>, vector<1x128xf32>
    %26 = vector.broadcast %25 : vector<1x128xf32> to vector<256x128xf32>
    %27 = arith.addf %24, %26 : vector<256x128xf32>
    %c0_19 = arith.constant 0 : index
    %c0_20 = arith.constant 0 : index
    %28 = vector.load %arg8[%c0_19, %c0_20] : memref<256x128xf32, #tpu.memory_space<vmem>>, vector<256x128xf32>
    tpu.vector_store %arg8[%c0_19, %c0_20], %27 {strides = array<i32>} : memref<256x128xf32, #tpu.memory_space<vmem>>, vector<256x128xf32>,
    return
  }
  func.func @transform_0(%arg0: i32) -> (i32, i32) {
    %c0_i32 = arith.constant 0 : i32
    %c0_i32_0 = arith.constant 0 : i32
    return %arg0, %c0_i32 : i32, i32
  }
  func.func @transform_1(%arg0: i32) -> (i32, i32) {
    %c0_i32 = arith.constant 0 : i32
    %c0_i32_0 = arith.constant 0 : i32
    %c0_i32_1 = arith.constant 0 : i32
    return %c0_i32, %c0_i32_0 : i32, i32
  }
  func.func @transform_2(%arg0: i32) -> (i32, i32) {
    %c0_i32 = arith.constant 0 : i32
    %c0_i32_0 = arith.constant 0 : i32
    %c0_i32_1 = arith.constant 0 : i32
    return %c0_i32, %c0_i32_0 : i32, i32
  }
  func.func @transform_3(%arg0: i32) -> (i32, i32) {
    %c0_i32 = arith.constant 0 : i32
    %c0_i32_0 = arith.constant 0 : i32
    %c0_i32_1 = arith.constant 0 : i32
    return %c0_i32, %c0_i32_0 : i32, i32
  }
  func.func @transform_4(%arg0: i32) -> (i32, i32) {
    %c0_i32 = arith.constant 0 : i32
    %c0_i32_0 = arith.constant 0 : i32
    %c0_i32_1 = arith.constant 0 : i32
    return %c0_i32, %c0_i32_0 : i32, i32
  }
  func.func @transform_5(%arg0: i32) -> (i32, i32) {
    %c0_i32 = arith.constant 0 : i32
    %c0_i32_0 = arith.constant 0 : i32
    %c0_i32_1 = arith.constant 0 : i32
    return %c0_i32, %c0_i32_0 : i32, i32
  }
  func.func @transform_6(%arg0: i32) -> (i32, i32) {
    %c0_i32 = arith.constant 0 : i32
    %c0_i32_0 = arith.constant 0 : i32
    %c0_i32_1 = arith.constant 0 : i32
    return %c0_i32, %c0_i32_0 : i32, i32
  }
  func.func @transform_7(%arg0: i32) -> (i32, i32) {
    %c0_i32 = arith.constant 0 : i32
    %c0_i32_0 = arith.constant 0 : i32
    return %arg0, %c0_i32 : i32, i32
  }
}

</mosaic_0001>

<llo_original>
// kernel: edge_attr_predictor_forward.6
$region0: #{edge_attr_predictor_forward.6}
  #allocation0 [shape = 'u32[]', space=smem, size = 0x4, offset = 0x4, fixed_abs, tag = 'smem constant byte address 0x4 - core index']
  #allocation1 [shape = 'u32[72,128]{1,0:T(1,128)}', space=vmem, size = 0x9000, scoped, tag = 'internal scratch']
  %s0 = inlined_call_operand.vmem [shape: f32[112,128], index: 0, kind: input, shape index: {}]
  %s1 = inlined_call_operand.vmem [shape: f32[2,128], index: 1, kind: input, shape index: {}]
  %s2 = inlined_call_operand.vmem [shape: bf16[112,128], index: 2, kind: output, shape index: {}]
  %s3 = sld [smem:[#allocation0]]
  $region18: #{edge_attr_predictor_forward.6} parent=0
    _
  %s5 = ssub.s32 1, %s3
  %s6 = scalar_select 0, %s5, %s3
  // Predicated region
  $region2: #{edge_attr_predictor_forward.6} parent=0 // pred_check
    _
  $region3: #{edge_attr_predictor_forward.6} parent=0 // pred_check_branch
    %8 = sbr.rel (0) target = $region5
  $region4: #{edge_attr_predictor_forward.6} parent=0 // pred_region
    _
  $region5: #{edge_attr_predictor_forward.6} parent=0 // pred_fallthru
    _
  // Predicated region
  $region6: #{edge_attr_predictor_forward.6} parent=0 // pred_check
    _
  $region7: #{edge_attr_predictor_forward.6} parent=0 // pred_check_branch
    %10 = sbr.rel (0) target = $region9
  $region8: #{edge_attr_predictor_forward.6} parent=0 // pred_region
    _
  $region9: #{edge_attr_predictor_forward.6} parent=0 // pred_fallthru
    _
  %v11 = vld [vmem:[%s1] sm:$0x3]
  %v12 = vld [vmem:[%s0] sm:$0xff]
  %v13 = vld [vmem:[%s0 + $0x8] sm:$0xff]
  %v14 = vld [vmem:[%s0 + $0x10] sm:$0xff]
  %v15 = vld [vmem:[%s0 + $0x18] sm:$0xff]
  %v16 = vld [vmem:[%s0 + $0x20] sm:$0xff]
  %v17 = vld [vmem:[%s0 + $0x28] sm:$0xff]
  %v18 = vld [vmem:[%s0 + $0x30] sm:$0xff]
  %v19 = vld [vmem:[%s0 + $0x38] sm:$0xff]
  %v20 = vld [vmem:[%s0 + $0x40] sm:$0xff]
  %v21 = vld [vmem:[%s0 + $0x48] sm:$0xff]
  %v22 = vld [vmem:[%s0 + $0x50] sm:$0xff]
  %v23 = vld [vmem:[%s0 + $0x58] sm:$0xff]
  %v24 = vld [vmem:[%s0 + $0x60] sm:$0xff]
  %v25 = vld [vmem:[%s0 + $0x68] sm:$0xff]
  %v26 = vperm.slane %v11, 0
  %v27 = vsub.f32 %v12, %v26
  %v28 = vsub.f32 %v13, %v26
  %v29 = vsub.f32 %v14, %v26
  %v30 = vsub.f32 %v15, %v26
  %v31 = vsub.f32 %v16, %v26
  %v32 = vsub.f32 %v17, %v26
  %v33 = vsub.f32 %v18, %v26
  %v34 = vsub.f32 %v19, %v26
  %v35 = vsub.f32 %v20, %v26
  %v36 = vsub.f32 %v21, %v26
  %v37 = vsub.f32 %v22, %v26
  %v38 = vsub.f32 %v23, %v26
  %v39 = vsub.f32 %v24, %v26
  %v40 = vsub.f32 %v25, %v26
  %v41 = vperm.slane %v11, 1
  %v42 = vmul.f32 %v27, %v41
  %v43 = vmul.f32 %v28, %v41
  %v44 = vmul.f32 %v29, %v41
  %v45 = vmul.f32 %v30, %v41
  %v46 = vmul.f32 %v31, %v41
  %v47 = vmul.f32 %v32, %v41
  %v48 = vmul.f32 %v33, %v41
  %v49 = vmul.f32 %v34, %v41
  %v50 = vmul.f32 %v35, %v41
  %v51 = vmul.f32 %v36, %v41
  %v52 = vmul.f32 %v37, %v41
  %v53 = vmul.f32 %v38, %v41
  %v54 = vmul.f32 %v39, %v41
  %v55 = vmul.f32 %v40, %v41
  %vm56 = vcmp.gt.f32.partialorder %v42, 0.0
  %vm57 = vcmp.gt.f32.partialorder %v43, 0.0
  %vm58 = vcmp.gt.f32.partialorder %v44, 0.0
  %vm59 = vcmp.gt.f32.partialorder %v45, 0.0
  %vm60 = vcmp.gt.f32.partialorder %v46, 0.0
  %vm61 = vcmp.gt.f32.partialorder %v47, 0.0
  %vm62 = vcmp.gt.f32.partialorder %v48, 0.0
  %vm63 = vcmp.gt.f32.partialorder %v49, 0.0
  %vm64 = vcmp.gt.f32.partialorder %v50, 0.0
  %vm65 = vcmp.gt.f32.partialorder %v51, 0.0
  %vm66 = vcmp.gt.f32.partialorder %v52, 0.0
  %vm67 = vcmp.gt.f32.partialorder %v53, 0.0
  %vm68 = vcmp.gt.f32.partialorder %v54, 0.0
  %vm69 = vcmp.gt.f32.partialorder %v55, 0.0
  %v70 = vmul.f32 %v42, 0.1
  %v71 = vmul.f32 %v43, 0.1
  %v72 = vmul.f32 %v44, 0.1
  %v73 = vmul.f32 %v45, 0.1
  %v74 = vmul.f32 %v46, 0.1
  %v75 = vmul.f32 %v47, 0.1
  %v76 = vmul.f32 %v48, 0.1
  %v77 = vmul.f32 %v49, 0.1
  %v78 = vmul.f32 %v50, 0.1
  %v79 = vmul.f32 %v51, 0.1
  %v80 = vmul.f32 %v52, 0.1
  %v81 = vmul.f32 %v53, 0.1
  %v82 = vmul.f32 %v54, 0.1
  %v83 = vmul.f32 %v55, 0.1
  %v84 = vsel %vm56, %v42, %v70
  %v85 = vsel %vm57, %v43, %v71
  %v86 = vsel %vm58, %v44, %v72
  %v87 = vsel %vm59, %v45, %v73
  %v88 = vsel %vm60, %v46, %v74
  %v89 = vsel %vm61, %v47, %v75
  %v90 = vsel %vm62, %v48, %v76
  %v91 = vsel %vm63, %v49, %v77
  %v92 = vsel %vm64, %v50, %v78
  %v93 = vsel %vm65, %v51, %v79
  %v94 = vsel %vm66, %v52, %v80
  %v95 = vsel %vm67, %v53, %v81
  %v96 = vsel %vm68, %v54, %v82
  %v97 = vsel %vm69, %v55, %v83
  %s98 = smul.u32 0, 112
  %v99 = vlaneseq
  %v100 = vshrl.u32 %v99, 7
  %v101 = vadd.s32 %v100, 8
  %v102 = vadd.s32 %v100, 16
  %v103 = vadd.s32 %v100, 24
  %v104 = vadd.s32 %v100, 32
  %v105 = vadd.s32 %v100, 40
  %v106 = vadd.s32 %v100, 48
  %v107 = vadd.s32 %v100, 56
  %v108 = vadd.s32 %v100, 64
  %v109 = vadd.s32 %v100, 72
  %v110 = vadd.s32 %v100, 80
  %v111 = vadd.s32 %v100, 88
  %v112 = vadd.s32 %v100, 96
  %v113 = vadd.s32 %v100, 104
  %v114 = vstv %s98
  %v115 = vadd.s32 %v114, %v100
  %v116 = vadd.s32 %v114, %v101
  %v117 = vadd.s32 %v114, %v102
  %v118 = vadd.s32 %v114, %v103
  %v119 = vadd.s32 %v114, %v104
  %v120 = vadd.s32 %v114, %v105
  %v121 = vadd.s32 %v114, %v106
  %v122 = vadd.s32 %v114, %v107
  %v123 = vadd.s32 %v114, %v108
  %v124 = vadd.s32 %v114, %v109
  %v125 = vadd.s32 %v114, %v110
  %v126 = vadd.s32 %v114, %v111
  %v127 = vadd.s32 %v114, %v112
  %v128 = vadd.s32 %v114, %v113
  %vm129 = vcmp.lt.s32.totalorder %v115, 110
  %vm130 = vcmp.lt.s32.totalorder %v116, 110
  %vm131 = vcmp.lt.s32.totalorder %v117, 110
  %vm132 = vcmp.lt.s32.totalorder %v118, 110
  %vm133 = vcmp.lt.s32.totalorder %v119, 110
  %vm134 = vcmp.lt.s32.totalorder %v120, 110
  %vm135 = vcmp.lt.s32.totalorder %v121, 110
  %vm136 = vcmp.lt.s32.totalorder %v122, 110
  %vm137 = vcmp.lt.s32.totalorder %v123, 110
  %vm138 = vcmp.lt.s32.totalorder %v124, 110
  %vm139 = vcmp.lt.s32.totalorder %v125, 110
  %vm140 = vcmp.lt.s32.totalorder %v126, 110
  %vm141 = vcmp.lt.s32.totalorder %v127, 110
  %vm142 = vcmp.lt.s32.totalorder %v128, 110
  %v143 = vsel %vm129, %v84, 0.0
  %v144 = vsel %vm130, %v85, 0.0
  %v145 = vsel %vm131, %v86, 0.0
  %v146 = vsel %vm132, %v87, 0.0
  %v147 = vsel %vm133, %v88, 0.0
  %v148 = vsel %vm134, %v89, 0.0
  %v149 = vsel %vm135, %v90, 0.0
  %v150 = vsel %vm136, %v91, 0.0
  %v151 = vsel %vm137, %v92, 0.0
  %v152 = vsel %vm138, %v93, 0.0
  %v153 = vsel %vm139, %v94, 0.0
  %v154 = vsel %vm140, %v95, 0.0
  %v155 = vsel %vm141, %v96, 0.0
  %v156 = vsel %vm142, %v97, 0.0
  %v157 = vpack.c.bf16 %v143, %v143
  %v158 = vpack.c.bf16 %v144, %v144
  %v159 = vpack.c.bf16 %v145, %v145
  %v160 = vpack.c.bf16 %v146, %v146
  %v161 = vpack.c.bf16 %v147, %v147
  %v162 = vpack.c.bf16 %v148, %v148
  %v163 = vpack.c.bf16 %v149, %v149
  %v164 = vpack.c.bf16 %v150, %v150
  %v165 = vpack.c.bf16 %v151, %v151
  %v166 = vpack.c.bf16 %v152, %v152
  %v167 = vpack.c.bf16 %v153, %v153
  %v168 = vpack.c.bf16 %v154, %v154
  %v169 = vpack.c.bf16 %v155, %v155
  %v170 = vpack.c.bf16 %v156, %v156
  %171 = vst [vmem:[%s2] sm:$0xf] %v157
  %172 = vst [vmem:[%s2 + $0x4] sm:$0xf] %v158
  %173 = vst [vmem:[%s2 + $0x8] sm:$0xf] %v159
  %174 = vst [vmem:[%s2 + $0xc] sm:$0xf] %v160
  %175 = vst [vmem:[%s2 + $0x10] sm:$0xf] %v161
  %176 = vst [vmem:[%s2 + $0x14] sm:$0xf] %v162
  %177 = vst [vmem:[%s2 + $0x18] sm:$0xf] %v163
  %178 = vst [vmem:[%s2 + $0x1c] sm:$0xf] %v164
  %179 = vst [vmem:[%s2 + $0x20] sm:$0xf] %v165
  %180 = vst [vmem:[%s2 + $0x24] sm:$0xf] %v166
  %181 = vst [vmem:[%s2 + $0x28] sm:$0xf] %v167
  %182 = vst [vmem:[%s2 + $0x2c] sm:$0xf] %v168
  %183 = vst [vmem:[%s2 + $0x30] sm:$0xf] %v169
  %184 = vst [vmem:[%s2 + $0x34] sm:$0xf] %v170
  // Predicated region
  $region10: #{edge_attr_predictor_forward.6} parent=0 // pred_check
    _
  $region11: #{edge_attr_predictor_forward.6} parent=0 // pred_check_branch
    %186 = sbr.rel (0) target = $region13
  $region12: #{edge_attr_predictor_forward.6} parent=0 // pred_region
    _
  $region13: #{edge_attr_predictor_forward.6} parent=0 // pred_fallthru
    _
  // Predicated region
  $region14: #{edge_attr_predictor_forward.6} parent=0 // pred_check
    _
  $region15: #{edge_attr_predictor_forward.6} parent=0 // pred_check_branch
    %188 = sbr.rel (0) target = $region17
  $region16: #{edge_attr_predictor_forward.6} parent=0 // pred_region
    _
  $region17: #{edge_attr_predictor_forward.6} parent=0 // pred_fallthru
    _

// kernel: edge_attr_predictor_forward.5
$region0: #{edge_attr_predictor_forward.5}
  #allocation0 [shape = 'u32[]', space=smem, size = 0x4, offset = 0x4, fixed_abs, tag = 'smem constant byte address 0x4 - core index']
  #allocation1 [shape = 'u32[72,128]{1,0:T(1,128)}', space=vmem, size = 0x9000, scoped, tag = 'internal scratch']
  %s0 = inlined_call_operand.vmem [shape: bf16[112,256], index: 0, kind: input, shape index: {}]
  %s1 = inlined_call_operand.vmem [shape: bf16[256,128], index: 1, kind: input, shape index: {}]
  %s2 = inlined_call_operand.vmem [shape: f32[1,128], index: 2, kind: input, shape index: {}]
  %s3 = inlined_call_operand.vmem [shape: f32[112,128], index: 3, kind: output, shape index: {0}]
  %s4 = inlined_call_operand.vmem [shape: f32[1,128], index: 4, kind: output, shape index: {1}]
  %s5 = inlined_call_operand.vmem [shape: f32[1,128], index: 5, kind: output, shape index: {2}]
  %6 = xla_tuple %s3, %s4, %s5
  %s7 = sld [smem:[#allocation0]]
  $region42: #{edge_attr_predictor_forward.5} parent=0
    _
  %s9 = ssub.s32 1, %s7
  %s10 = scalar_select 0, %s9, %s7
  // Predicated region
  $region2: #{edge_attr_predictor_forward.5} parent=0 // pred_check
    _
  $region3: #{edge_attr_predictor_forward.5} parent=0 // pred_check_branch
    %12 = sbr.rel (0) target = $region5
  $region4: #{edge_attr_predictor_forward.5} parent=0 // pred_region
    _
  $region5: #{edge_attr_predictor_forward.5} parent=0 // pred_fallthru
    _
  // Predicated region
  $region6: #{edge_attr_predictor_forward.5} parent=0 // pred_check
    _
  $region7: #{edge_attr_predictor_forward.5} parent=0 // pred_check_branch
    %14 = sbr.rel (0) target = $region9
  $region8: #{edge_attr_predictor_forward.5} parent=0 // pred_region
    _
  $region9: #{edge_attr_predictor_forward.5} parent=0 // pred_fallthru
    _
  // Predicated region
  $region10: #{edge_attr_predictor_forward.5} parent=0 // pred_check
    _
  $region11: #{edge_attr_predictor_forward.5} parent=0 // pred_check_branch
    %16 = sbr.rel (0) target = $region13
  $region12: #{edge_attr_predictor_forward.5} parent=0 // pred_region
    _
  $region13: #{edge_attr_predictor_forward.5} parent=0 // pred_fallthru
    _
  %p17 = scmp.eq.s32.totalorder 0, 0
  // Predicated region
  $region14: #{edge_attr_predictor_forward.5} parent=0 // pred_check
    %p18 = pneg %p17
  $region15: #{edge_attr_predictor_forward.5} parent=0 // pred_check_branch
    %20 = sbr.rel (%p18) target = $region17
  $region16: #{edge_attr_predictor_forward.5} parent=0 // pred_region
    %21 = vst [vmem:[%s4] sm:$0x1] 0.0
    %22 = vst [vmem:[%s5] sm:$0x1] 0.0
  $region17: #{edge_attr_predictor_forward.5} parent=0 // pred_fallthru
    _
  %v23 = vld [vmem:[%s0] sm:$0xff]
  %v24 = vld [vmem:[%s0 + $0x8] sm:$0xff]
  %v25 = vld [vmem:[%s0 + $0x10] sm:$0xff]
  %v26 = vld [vmem:[%s0 + $0x18] sm:$0xff]
  %v27 = vld [vmem:[%s0 + $0x20] sm:$0xff]
  %v28 = vld [vmem:[%s0 + $0x28] sm:$0xff]
  %v29 = vld [vmem:[%s0 + $0x30] sm:$0xff]
  %v30 = vld [vmem:[%s0 + $0x38] sm:$0xff]
  %v31 = vld [vmem:[%s0 + $0x40] sm:$0xff]
  %v32 = vld [vmem:[%s0 + $0x48] sm:$0xff]
  %v33 = vld [vmem:[%s0 + $0x50] sm:$0xff]
  %v34 = vld [vmem:[%s0 + $0x58] sm:$0xff]
  %v35 = vld [vmem:[%s0 + $0x60] sm:$0xff]
  %v36 = vld [vmem:[%s0 + $0x68] sm:$0xff]
  %v37 = vld [vmem:[%s1] sm:$0xf]
  %v38 = vld [vmem:[%s1 + $0x4] sm:$0xf]
  %v39 = vld [vmem:[%s1 + $0x8] sm:$0xf]
  %v40 = vld [vmem:[%s1 + $0xc] sm:$0xf]
  %v41 = vld [vmem:[%s1 + $0x10] sm:$0xf]
  %v42 = vld [vmem:[%s1 + $0x14] sm:$0xf]
  %v43 = vld [vmem:[%s1 + $0x18] sm:$0xf]
  %v44 = vld [vmem:[%s1 + $0x1c] sm:$0xf]
  %v45 = vld [vmem:[%s1 + $0x20] sm:$0xf]
  %v46 = vld [vmem:[%s1 + $0x24] sm:$0xf]
  %v47 = vld [vmem:[%s1 + $0x28] sm:$0xf]
  %v48 = vld [vmem:[%s1 + $0x2c] sm:$0xf]
  %v49 = vld [vmem:[%s1 + $0x30] sm:$0xf]
  %v50 = vld [vmem:[%s1 + $0x34] sm:$0xf]
  %v51 = vld [vmem:[%s1 + $0x38] sm:$0xf]
  %v52 = vld [vmem:[%s1 + $0x3c] sm:$0xf]
  %v53 = vld [vmem:[%s1 + $0x40] sm:$0xf]
  %v54 = vld [vmem:[%s1 + $0x44] sm:$0xf]
  %v55 = vld [vmem:[%s1 + $0x48] sm:$0xf]
  %v56 = vld [vmem:[%s1 + $0x4c] sm:$0xf]
  %v57 = vld [vmem:[%s1 + $0x50] sm:$0xf]
  %v58 = vld [vmem:[%s1 + $0x54] sm:$0xf]
  %v59 = vld [vmem:[%s1 + $0x58] sm:$0xf]
  %v60 = vld [vmem:[%s1 + $0x5c] sm:$0xf]
  %v61 = vld [vmem:[%s1 + $0x60] sm:$0xf]
  %v62 = vld [vmem:[%s1 + $0x64] sm:$0xf]
  %v63 = vld [vmem:[%s1 + $0x68] sm:$0xf]
  %v64 = vld [vmem:[%s1 + $0x6c] sm:$0xf]
  %v65 = vld [vmem:[%s1 + $0x70] sm:$0xf]
  %v66 = vld [vmem:[%s1 + $0x74] sm:$0xf]
  %v67 = vld [vmem:[%s1 + $0x78] sm:$0xf]
  %v68 = vld [vmem:[%s1 + $0x7c] sm:$0xf]
  %v69 = vld [vmem:[%s2] sm:$0x1]
  %v71 = vperm.slane %v69, 0
  %v87 = vunpack.c.l.b16 %v23
  %v88 = vunpack.c.h.b16 %v23
  %v89 = vunpack.c.l.b16 %v24
  %v90 = vunpack.c.h.b16 %v24
  %v91 = vunpack.c.l.b16 %v25
  %v92 = vunpack.c.h.b16 %v25
  %v93 = vunpack.c.l.b16 %v26
  %v94 = vunpack.c.h.b16 %v26
  %v95 = vunpack.c.l.b16 %v27
  %v96 = vunpack.c.h.b16 %v27
  %v97 = vunpack.c.l.b16 %v28
  %v98 = vunpack.c.h.b16 %v28
  %v99 = vunpack.c.l.b16 %v29
  %v100 = vunpack.c.h.b16 %v29
  %v101 = vunpack.c.l.b16 %v30
  %v102 = vunpack.c.h.b16 %v30
  %v103 = vunpack.c.l.b16 %v31
  %v104 = vunpack.c.h.b16 %v31
  %v105 = vunpack.c.l.b16 %v32
  %v106 = vunpack.c.h.b16 %v32
  %v107 = vunpack.c.l.b16 %v33
  %v108 = vunpack.c.h.b16 %v33
  %v109 = vunpack.c.l.b16 %v34
  %v110 = vunpack.c.h.b16 %v34
  %v111 = vunpack.c.l.b16 %v35
  %v112 = vunpack.c.h.b16 %v35
  %v113 = vunpack.c.l.b16 %v36
  %v114 = vunpack.c.h.b16 %v36
  %v115 = vpack.c.b16 %v89, %v87
  %v116 = vpack.c.b16 %v90, %v88
  %v117 = vpack.c.b16 %v93, %v91
  %v118 = vpack.c.b16 %v94, %v92
  %v119 = vpack.c.b16 %v97, %v95
  %v120 = vpack.c.b16 %v98, %v96
  %v121 = vpack.c.b16 %v101, %v99
  %v122 = vpack.c.b16 %v102, %v100
  %v123 = vpack.c.b16 %v105, %v103
  %v124 = vpack.c.b16 %v106, %v104
  %v125 = vpack.c.b16 %v109, %v107
  %v126 = vpack.c.b16 %v110, %v108
  %v127 = vpack.c.b16 %v113, %v111
  %v128 = vpack.c.b16 %v114, %v112
  %v175 = vunpack.c.l.b16 %v37
  %v176 = vunpack.c.l.b16 %v38
  %v177 = vunpack.c.l.b16 %v39
  %v178 = vunpack.c.l.b16 %v40
  %v179 = vunpack.c.l.b16 %v41
  %v180 = vunpack.c.l.b16 %v42
  %v181 = vunpack.c.l.b16 %v43
  %v182 = vunpack.c.l.b16 %v44
  %v183 = vunpack.c.l.b16 %v45
  %v184 = vunpack.c.l.b16 %v46
  %v185 = vunpack.c.l.b16 %v47
  %v186 = vunpack.c.l.b16 %v48
  %v187 = vunpack.c.l.b16 %v49
  %v188 = vunpack.c.l.b16 %v50
  %v189 = vunpack.c.l.b16 %v51
  %v190 = vunpack.c.l.b16 %v52
  %v191 = vunpack.c.l.b16 %v53
  %v192 = vunpack.c.l.b16 %v54
  %v193 = vunpack.c.l.b16 %v55
  %v194 = vunpack.c.l.b16 %v56
  %v195 = vunpack.c.l.b16 %v57
  %v196 = vunpack.c.l.b16 %v58
  %v197 = vunpack.c.l.b16 %v59
  %v198 = vunpack.c.l.b16 %v60
  %v199 = vunpack.c.l.b16 %v61
  %v200 = vunpack.c.l.b16 %v62
  %v201 = vunpack.c.l.b16 %v63
  %v202 = vunpack.c.l.b16 %v64
  %v203 = vunpack.c.l.b16 %v65
  %v204 = vunpack.c.l.b16 %v66
  %v205 = vunpack.c.l.b16 %v67
  %v206 = vunpack.c.l.b16 %v68
  %v207 = vpack.c.b16 %v176, %v175
  %v208 = vpack.c.b16 %v178, %v177
  %v209 = vpack.c.b16 %v180, %v179
  %v210 = vpack.c.b16 %v182, %v181
  %v211 = vpack.c.b16 %v184, %v183
  %v212 = vpack.c.b16 %v186, %v185
  %v213 = vpack.c.b16 %v188, %v187
  %v214 = vpack.c.b16 %v190, %v189
  %v215 = vpack.c.b16 %v192, %v191
  %v216 = vpack.c.b16 %v194, %v193
  %v217 = vpack.c.b16 %v196, %v195
  %v218 = vpack.c.b16 %v198, %v197
  %v219 = vpack.c.b16 %v200, %v199
  %v220 = vpack.c.b16 %v202, %v201
  %v221 = vpack.c.b16 %v204, %v203
  %v222 = vpack.c.b16 %v206, %v205
  %239 = vmatpush.bf16.msra.mxu0 %v214
  %240 = vmatpush.bf16.msra.mxu0 %v213
  %241 = vmatpush.bf16.msra.mxu0 %v212
  %242 = vmatpush.bf16.msra.mxu0 %v211
  %243 = vmatpush.bf16.msra.mxu0 %v210
  %244 = vmatpush.bf16.msra.mxu0 %v209
  %245 = vmatpush.bf16.msra.mxu0 %v208
  %246 = vmatpush.bf16.msra.mxu0 %v207
  %247 = vmatmul.bf16.gmra.mxu0 %v115
  %v248 = vpop.f32.mrf.mxu0
  %v249 = vadd.f32 %v71, %v248
  %v250 = vpop.f32.mrf.mxu0
  %v251 = vadd.f32 %v71, %v250
  %252 = vmatmul.bf16.gmra.mxu0 %v117
  %v253 = vpop.f32.mrf.mxu0
  %v254 = vadd.f32 %v71, %v253
  %v255 = vpop.f32.mrf.mxu0
  %v256 = vadd.f32 %v71, %v255
  %257 = vmatmul.bf16.gmra.mxu0 %v119
  %v258 = vpop.f32.mrf.mxu0
  %v259 = vadd.f32 %v71, %v258
  %v260 = vpop.f32.mrf.mxu0
  %v261 = vadd.f32 %v71, %v260
  %262 = vmatmul.bf16.gmra.mxu0 %v121
  %v263 = vpop.f32.mrf.mxu0
  %v264 = vadd.f32 %v71, %v263
  %v265 = vpop.f32.mrf.mxu0
  %v266 = vadd.f32 %v71, %v265
  %267 = vmatmul.bf16.gmra.mxu0 %v123
  %v268 = vpop.f32.mrf.mxu0
  %v269 = vadd.f32 %v71, %v268
  %v270 = vpop.f32.mrf.mxu0
  %v271 = vadd.f32 %v71, %v270
  %272 = vmatmul.bf16.gmra.mxu0 %v125
  %v273 = vpop.f32.mrf.mxu0
  %v274 = vadd.f32 %v71, %v273
  %v275 = vpop.f32.mrf.mxu0
  %v276 = vadd.f32 %v71, %v275
  %277 = vmatmul.bf16.gmra.mxu0 %v127
  %v278 = vpop.f32.mrf.mxu0
  %v279 = vadd.f32 %v71, %v278
  %v280 = vpop.f32.mrf.mxu0
  %v281 = vadd.f32 %v71, %v280
  %282 = vdwg.mxu0
  %283 = vmatpush.bf16.msra.mxu0 %v222
  %284 = vmatpush.bf16.msra.mxu0 %v221
  %285 = vmatpush.bf16.msra.mxu0 %v220
  %286 = vmatpush.bf16.msra.mxu0 %v219
  %287 = vmatpush.bf16.msra.mxu0 %v218
  %288 = vmatpush.bf16.msra.mxu0 %v217
  %289 = vmatpush.bf16.msra.mxu0 %v216
  %290 = vmatpush.bf16.msra.mxu0 %v215
  %291 = vmatmul.bf16.gmra.mxu0 %v116
  %v292 = vpop.f32.mrf.mxu0
  %v293 = vadd.f32 %v249, %v292
  %v294 = vpop.f32.mrf.mxu0
  %v295 = vadd.f32 %v251, %v294
  %296 = vmatmul.bf16.gmra.mxu0 %v118
  %v297 = vpop.f32.mrf.mxu0
  %v298 = vadd.f32 %v254, %v297
  %v299 = vpop.f32.mrf.mxu0
  %v300 = vadd.f32 %v256, %v299
  %301 = vmatmul.bf16.gmra.mxu0 %v120
  %v302 = vpop.f32.mrf.mxu0
  %v303 = vadd.f32 %v259, %v302
  %v304 = vpop.f32.mrf.mxu0
  %v305 = vadd.f32 %v261, %v304
  %306 = vmatmul.bf16.gmra.mxu0 %v122
  %v307 = vpop.f32.mrf.mxu0
  %v308 = vadd.f32 %v264, %v307
  %v309 = vpop.f32.mrf.mxu0
  %v310 = vadd.f32 %v266, %v309
  %311 = vmatmul.bf16.gmra.mxu0 %v124
  %v312 = vpop.f32.mrf.mxu0
  %v313 = vadd.f32 %v269, %v312
  %v314 = vpop.f32.mrf.mxu0
  %v315 = vadd.f32 %v271, %v314
  %316 = vmatmul.bf16.gmra.mxu0 %v126
  %v317 = vpop.f32.mrf.mxu0
  %v318 = vadd.f32 %v274, %v317
  %v319 = vpop.f32.mrf.mxu0
  %v320 = vadd.f32 %v276, %v319
  %321 = vmatmul.bf16.gmra.mxu0 %v128
  %v322 = vpop.f32.mrf.mxu0
  %v323 = vadd.f32 %v279, %v322
  %v324 = vpop.f32.mrf.mxu0
  %v325 = vadd.f32 %v281, %v324
  %326 = vdwg.mxu0
  %327 = vst [vmem:[%s3] sm:$0xff] %v293
  %328 = vst [vmem:[%s3 + $0x8] sm:$0xff] %v295
  %329 = vst [vmem:[%s3 + $0x10] sm:$0xff] %v298
  %330 = vst [vmem:[%s3 + $0x18] sm:$0xff] %v300
  %331 = vst [vmem:[%s3 + $0x20] sm:$0xff] %v303
  %332 = vst [vmem:[%s3 + $0x28] sm:$0xff] %v305
  %333 = vst [vmem:[%s3 + $0x30] sm:$0xff] %v308
  %334 = vst [vmem:[%s3 + $0x38] sm:$0xff] %v310
  %335 = vst [vmem:[%s3 + $0x40] sm:$0xff] %v313
  %336 = vst [vmem:[%s3 + $0x48] sm:$0xff] %v315
  %337 = vst [vmem:[%s3 + $0x50] sm:$0xff] %v318
  %338 = vst [vmem:[%s3 + $0x58] sm:$0xff] %v320
  %339 = vst [vmem:[%s3 + $0x60] sm:$0xff] %v323
  %340 = vst [vmem:[%s3 + $0x68] sm:$0xff] %v325
  %s341 = smul.u32 0, 112
  %v342 = vlaneseq
  %v343 = vshrl.u32 %v342, 7
  %v344 = vadd.s32 %v343, 8
  %v345 = vadd.s32 %v343, 16
  %v346 = vadd.s32 %v343, 24
  %v347 = vadd.s32 %v343, 32
  %v348 = vadd.s32 %v343, 40
  %v349 = vadd.s32 %v343, 48
  %v350 = vadd.s32 %v343, 56
  %v351 = vadd.s32 %v343, 64
  %v352 = vadd.s32 %v343, 72
  %v353 = vadd.s32 %v343, 80
  %v354 = vadd.s32 %v343, 88
  %v355 = vadd.s32 %v343, 96
  %v356 = vadd.s32 %v343, 104
  %v357 = vstv %s341
  %v358 = vadd.s32 %v357, %v343
  %v359 = vadd.s32 %v357, %v344
  %v360 = vadd.s32 %v357, %v345
  %v361 = vadd.s32 %v357, %v346
  %v362 = vadd.s32 %v357, %v347
  %v363 = vadd.s32 %v357, %v348
  %v364 = vadd.s32 %v357, %v349
  %v365 = vadd.s32 %v357, %v350
  %v366 = vadd.s32 %v357, %v351
  %v367 = vadd.s32 %v357, %v352
  %v368 = vadd.s32 %v357, %v353
  %v369 = vadd.s32 %v357, %v354
  %v370 = vadd.s32 %v357, %v355
  %v371 = vadd.s32 %v357, %v356
  %vm372 = vcmp.lt.s32.totalorder %v358, 110
  %vm373 = vcmp.lt.s32.totalorder %v359, 110
  %vm374 = vcmp.lt.s32.totalorder %v360, 110
  %vm375 = vcmp.lt.s32.totalorder %v361, 110
  %vm376 = vcmp.lt.s32.totalorder %v362, 110
  %vm377 = vcmp.lt.s32.totalorder %v363, 110
  %vm378 = vcmp.lt.s32.totalorder %v364, 110
  %vm379 = vcmp.lt.s32.totalorder %v365, 110
  %vm380 = vcmp.lt.s32.totalorder %v366, 110
  %vm381 = vcmp.lt.s32.totalorder %v367, 110
  %vm382 = vcmp.lt.s32.totalorder %v368, 110
  %vm383 = vcmp.lt.s32.totalorder %v369, 110
  %vm384 = vcmp.lt.s32.totalorder %v370, 110
  %vm385 = vcmp.lt.s32.totalorder %v371, 110
  %v386 = vsel %vm372, %v293, 0.0
  %v387 = vsel %vm373, %v295, 0.0
  %v388 = vsel %vm374, %v298, 0.0
  %v389 = vsel %vm375, %v300, 0.0
  %v390 = vsel %vm376, %v303, 0.0
  %v391 = vsel %vm377, %v305, 0.0
  %v392 = vsel %vm378, %v308, 0.0
  %v393 = vsel %vm379, %v310, 0.0
  %v394 = vsel %vm380, %v313, 0.0
  %v395 = vsel %vm381, %v315, 0.0
  %v396 = vsel %vm382, %v318, 0.0
  %v397 = vsel %vm383, %v320, 0.0
  %v398 = vsel %vm384, %v323, 0.0
  %v399 = vsel %vm385, %v325, 0.0
  %v400 = vld [vmem:[%s4] sm:$0x1]
  %v401 = vadd.f32 %v386, %v387
  %v402 = vadd.f32 %v401, %v388
  %v403 = vadd.f32 %v402, %v389
  %v404 = vadd.f32 %v403, %v390
  %v405 = vadd.f32 %v404, %v391
  %v406 = vadd.f32 %v405, %v392
  %v407 = vadd.f32 %v406, %v393
  %v408 = vadd.f32 %v407, %v394
  %v409 = vadd.f32 %v408, %v395
  %v410 = vadd.f32 %v409, %v396
  %v411 = vadd.f32 %v410, %v397
  %v412 = vadd.f32 %v411, %v398
  %v413 = vadd.f32 %v412, %v399
  %v414 = vrot.slane %v413, 4
  %v415 = vadd.f32 %v413, %v414
  %v416 = vrot.slane %v415, 2
  %v417 = vadd.f32 %v415, %v416
  %v418 = vrot.slane %v417, 1
  %v419 = vadd.f32 %v417, %v418
  %v420 = vadd.f32 %v400, %v419
  %421 = vst [vmem:[%s4] sm:$0x1] %v420
  %v422 = vld [vmem:[%s5] sm:$0x1]
  %v423 = vmul.f32 %v386, %v386
  %v424 = vmul.f32 %v387, %v387
  %v425 = vmul.f32 %v388, %v388
  %v426 = vmul.f32 %v389, %v389
  %v427 = vmul.f32 %v390, %v390
  %v428 = vmul.f32 %v391, %v391
  %v429 = vmul.f32 %v392, %v392
  %v430 = vmul.f32 %v393, %v393
  %v431 = vmul.f32 %v394, %v394
  %v432 = vmul.f32 %v395, %v395
  %v433 = vmul.f32 %v396, %v396
  %v434 = vmul.f32 %v397, %v397
  %v435 = vmul.f32 %v398, %v398
  %v436 = vmul.f32 %v399, %v399
  %v437 = vadd.f32 %v423, %v424
  %v438 = vadd.f32 %v437, %v425
  %v439 = vadd.f32 %v438, %v426
  %v440 = vadd.f32 %v439, %v427
  %v441 = vadd.f32 %v440, %v428
  %v442 = vadd.f32 %v441, %v429
  %v443 = vadd.f32 %v442, %v430
  %v444 = vadd.f32 %v443, %v431
  %v445 = vadd.f32 %v444, %v432
  %v446 = vadd.f32 %v445, %v433
  %v447 = vadd.f32 %v446, %v434
  %v448 = vadd.f32 %v447, %v435
  %v449 = vadd.f32 %v448, %v436
  %v450 = vrot.slane %v449, 4
  %v451 = vadd.f32 %v449, %v450
  %v452 = vrot.slane %v451, 2
  %v453 = vadd.f32 %v451, %v452
  %v454 = vrot.slane %v453, 1
  %v455 = vadd.f32 %v453, %v454
  %v456 = vadd.f32 %v422, %v455
  %457 = vst [vmem:[%s5] sm:$0x1] %v456
  // Predicated region
  $region18: #{edge_attr_predictor_forward.5} parent=0 // pred_check
    _
  $region19: #{edge_attr_predictor_forward.5} parent=0 // pred_check_branch
    %459 = sbr.rel (0) target = $region21
  $region20: #{edge_attr_predictor_forward.5} parent=0 // pred_region
    _
  $region21: #{edge_attr_predictor_forward.5} parent=0 // pred_fallthru
    _
  // Predicated region
  $region22: #{edge_attr_predictor_forward.5} parent=0 // pred_check
    _
  $region23: #{edge_attr_predictor_forward.5} parent=0 // pred_check_branch
    %461 = sbr.rel (0) target = $region25
  $region24: #{edge_attr_predictor_forward.5} parent=0 // pred_region
    _
  $region25: #{edge_attr_predictor_forward.5} parent=0 // pred_fallthru
    _
  // Predicated region
  $region26: #{edge_attr_predictor_forward.5} parent=0 // pred_check
    _
  $region27: #{edge_attr_predictor_forward.5} parent=0 // pred_check_branch
    %463 = sbr.rel (0) target = $region29
  $region28: #{edge_attr_predictor_forward.5} parent=0 // pred_region
    _
  $region29: #{edge_attr_predictor_forward.5} parent=0 // pred_fallthru
    _
  // Predicated region
  $region30: #{edge_attr_predictor_forward.5} parent=0 // pred_check
    _
  $region31: #{edge_attr_predictor_forward.5} parent=0 // pred_check_branch
    %465 = sbr.rel (0) target = $region33
  $region32: #{edge_attr_predictor_forward.5} parent=0 // pred_region
    _
  $region33: #{edge_attr_predictor_forward.5} parent=0 // pred_fallthru
    _
  // Predicated region
  $region34: #{edge_attr_predictor_forward.5} parent=0 // pred_check
    _
  $region35: #{edge_attr_predictor_forward.5} parent=0 // pred_check_branch
    %467 = sbr.rel (0) target = $region37
  $region36: #{edge_attr_predictor_forward.5} parent=0 // pred_region
    _
  $region37: #{edge_attr_predictor_forward.5} parent=0 // pred_fallthru
    _
  // Predicated region
  $region38: #{edge_attr_predictor_forward.5} parent=0 // pred_check
    _
  $region39: #{edge_attr_predictor_forward.5} parent=0 // pred_check_branch
    %469 = sbr.rel (0) target = $region41
  $region40: #{edge_attr_predictor_forward.5} parent=0 // pred_region
    _
  $region41: #{edge_attr_predictor_forward.5} parent=0 // pred_fallthru
    _

// kernel: edge_attr_predictor_forward.9
$region0: #{edge_attr_predictor_forward.9}
  #allocation0 [shape = 'u32[]', space=smem, size = 0x4, offset = 0x4, fixed_abs, tag = 'smem constant byte address 0x4 - core index']
  #allocation1 [shape = 'u32[72,128]{1,0:T(1,128)}', space=vmem, size = 0x9000, scoped, tag = 'internal scratch']
  %s0 = inlined_call_operand.vmem [shape: bf16[512,256], index: 0, kind: input, shape index: {}]
  %s1 = inlined_call_operand.vmem [shape: bf16[256,128], index: 1, kind: input, shape index: {}]
  %s2 = inlined_call_operand.vmem [shape: f32[1,128], index: 2, kind: input, shape index: {}]
  %s3 = inlined_call_operand.vmem [shape: bf16[128,128], index: 3, kind: input, shape index: {}]
  %s4 = inlined_call_operand.vmem [shape: f32[1,128], index: 4, kind: input, shape index: {}]
  %s5 = inlined_call_operand.vmem [shape: bf16[128,128], index: 5, kind: input, shape index: {}]
  %s6 = inlined_call_operand.vmem [shape: f32[1,128], index: 6, kind: input, shape index: {}]
  %s7 = inlined_call_operand.vmem [shape: f32[512,128], index: 7, kind: output, shape index: {}]
  %s8 = sld [smem:[#allocation0]]
  $region61: #{edge_attr_predictor_forward.9} parent=0
    _
  %s10 = ssub.s32 1, %s8
  %s11 = scalar_select 0, %s10, %s8
  loop: start=0, step=1, limit=4
  $region2: #{edge_attr_predictor_forward.9} parent=0 // loop_pre_header
    _
  $region3: #{edge_attr_predictor_forward.9} parent=0 // loop_header
    %s13 = sphi 0, %s17
    %p14 = scmp.ge.s32.totalorder %s13, 4
    %s23 = sphi 0, %s25
    %s26 = sphi 0, %s23
    %s27 = sphi 0, %s26
    %s43 = sphi 0, %s27
    %s47 = sphi 0, %s47
    %s49 = sphi 0, %s47
    %s50 = sphi 0, %s49
    %s64 = sphi 0, %s50
    %s68 = sphi 0, %s68
    %s70 = sphi 0, %s68
    %s71 = sphi 0, %s70
    %s85 = sphi 0, %s71
    %s89 = sphi 0, %s89
    %s91 = sphi 0, %s89
    %s92 = sphi 0, %s91
    %s106 = sphi 0, %s92
    %s110 = sphi 0, %s110
    %s112 = sphi 0, %s110
    %s113 = sphi 0, %s112
    %s127 = sphi 0, %s113
    %s131 = sphi 0, %s131
    %s133 = sphi 0, %s131
    %s134 = sphi 0, %s133
    %s148 = sphi 0, %s134
    %s152 = sphi 0, %s152
    %s154 = sphi 0, %s152
    %s155 = sphi 0, %s154
    %s169 = sphi 0, %s155
    %s175 = sphi 0, %s177
    %s178 = sphi 0, %s175
    %s179 = sphi 0, %s178
    %s195 = sphi 0, %s179
  $region4: #{edge_attr_predictor_forward.9} parent=0 // loop_header_branch
    %16 = sbr.rel (%p14) target = $region8
  $region5: #{edge_attr_predictor_forward.9} parent=0 // loop_body
    %s18 = ssub.s32 %s13, 1
    %s19 = ssub.s32 %s13, 2
    %s20 = sadd.s32 %s13, 1
    %s21 = ssub.s32 %s13, %s20
    %p22 = scmp.eq.s32.totalorder %s21, 0
    %s24 = sadd.s32 %s23, 1
    %s25 = scalar_select %p22, %s23, %s24
    %p28 = pneg %p22
    %p29 = scmp.eq.s32.totalorder %s13, 1
    %p30 = por %p28, %p29
    %p31 = scmp.ne.s32.totalorder %s23, %s26
    %p32 = scmp.eq.s32.totalorder %s13, 0
    %p33 = por %p31, %p32
    %p34 = scmp.ne.s32.totalorder %s23, %s26
    %p35 = scmp.eq.s32.totalorder %s18, 1
    %p36 = por %p34, %p35
    %p37 = scmp.ne.s32.totalorder %s26, %s27
    %p38 = scmp.eq.s32.totalorder %s18, 0
    %p39 = por %p37, %p38
    %p40 = scmp.ne.s32.totalorder %s26, %s27
    %p41 = scmp.eq.s32.totalorder %s19, 1
    %p42 = por %p40, %p41
    %p44 = scmp.ne.s32.totalorder %s27, %s43
    %p45 = scmp.eq.s32.totalorder %s19, 0
    %p46 = por %p44, %p45
    %s48 = sadd.s32 %s47, 1
    %p51 = scmp.eq.s32.totalorder %s13, 1
    %p52 = scmp.ne.s32.totalorder %s47, %s49
    %p53 = scmp.eq.s32.totalorder %s13, 0
    %p54 = por %p52, %p53
    %p55 = scmp.ne.s32.totalorder %s47, %s49
    %p56 = scmp.eq.s32.totalorder %s18, 1
    %p57 = por %p55, %p56
    %p58 = scmp.ne.s32.totalorder %s49, %s50
    %p59 = scmp.eq.s32.totalorder %s18, 0
    %p60 = por %p58, %p59
    %p61 = scmp.ne.s32.totalorder %s49, %s50
    %p62 = scmp.eq.s32.totalorder %s19, 1
    %p63 = por %p61, %p62
    %p65 = scmp.ne.s32.totalorder %s50, %s64
    %p66 = scmp.eq.s32.totalorder %s19, 0
    %p67 = por %p65, %p66
    %s69 = sadd.s32 %s68, 1
    %p72 = scmp.eq.s32.totalorder %s13, 1
    %p73 = scmp.ne.s32.totalorder %s68, %s70
    %p74 = scmp.eq.s32.totalorder %s13, 0
    %p75 = por %p73, %p74
    %p76 = scmp.ne.s32.totalorder %s68, %s70
    %p77 = scmp.eq.s32.totalorder %s18, 1
    %p78 = por %p76, %p77
    %p79 = scmp.ne.s32.totalorder %s70, %s71
    %p80 = scmp.eq.s32.totalorder %s18, 0
    %p81 = por %p79, %p80
    %p82 = scmp.ne.s32.totalorder %s70, %s71
    %p83 = scmp.eq.s32.totalorder %s19, 1
    %p84 = por %p82, %p83
    %p86 = scmp.ne.s32.totalorder %s71, %s85
    %p87 = scmp.eq.s32.totalorder %s19, 0
    %p88 = por %p86, %p87
    %s90 = sadd.s32 %s89, 1
    %p93 = scmp.eq.s32.totalorder %s13, 1
    %p94 = scmp.ne.s32.totalorder %s89, %s91
    %p95 = scmp.eq.s32.totalorder %s13, 0
    %p96 = por %p94, %p95
    %p97 = scmp.ne.s32.totalorder %s89, %s91
    %p98 = scmp.eq.s32.totalorder %s18, 1
    %p99 = por %p97, %p98
    %p100 = scmp.ne.s32.totalorder %s91, %s92
    %p101 = scmp.eq.s32.totalorder %s18, 0
    %p102 = por %p100, %p101
    %p103 = scmp.ne.s32.totalorder %s91, %s92
    %p104 = scmp.eq.s32.totalorder %s19, 1
    %p105 = por %p103, %p104
    %p107 = scmp.ne.s32.totalorder %s92, %s106
    %p108 = scmp.eq.s32.totalorder %s19, 0
    %p109 = por %p107, %p108
    %s111 = sadd.s32 %s110, 1
    %p114 = scmp.eq.s32.totalorder %s13, 1
    %p115 = scmp.ne.s32.totalorder %s110, %s112
    %p116 = scmp.eq.s32.totalorder %s13, 0
    %p117 = por %p115, %p116
    %p118 = scmp.ne.s32.totalorder %s110, %s112
    %p119 = scmp.eq.s32.totalorder %s18, 1
    %p120 = por %p118, %p119
    %p121 = scmp.ne.s32.totalorder %s112, %s113
    %p122 = scmp.eq.s32.totalorder %s18, 0
    %p123 = por %p121, %p122
    %p124 = scmp.ne.s32.totalorder %s112, %s113
    %p125 = scmp.eq.s32.totalorder %s19, 1
    %p126 = por %p124, %p125
    %p128 = scmp.ne.s32.totalorder %s113, %s127
    %p129 = scmp.eq.s32.totalorder %s19, 0
    %p130 = por %p128, %p129
    %s132 = sadd.s32 %s131, 1
    %p135 = scmp.eq.s32.totalorder %s13, 1
    %p136 = scmp.ne.s32.totalorder %s131, %s133
    %p137 = scmp.eq.s32.totalorder %s13, 0
    %p138 = por %p136, %p137
    %p139 = scmp.ne.s32.totalorder %s131, %s133
    %p140 = scmp.eq.s32.totalorder %s18, 1
    %p141 = por %p139, %p140
    %p142 = scmp.ne.s32.totalorder %s133, %s134
    %p143 = scmp.eq.s32.totalorder %s18, 0
    %p144 = por %p142, %p143
    %p145 = scmp.ne.s32.totalorder %s133, %s134
    %p146 = scmp.eq.s32.totalorder %s19, 1
    %p147 = por %p145, %p146
    %p149 = scmp.ne.s32.totalorder %s134, %s148
    %p150 = scmp.eq.s32.totalorder %s19, 0
    %p151 = por %p149, %p150
    %s153 = sadd.s32 %s152, 1
    %p156 = scmp.eq.s32.totalorder %s13, 1
    %p157 = scmp.ne.s32.totalorder %s152, %s154
    %p158 = scmp.eq.s32.totalorder %s13, 0
    %p159 = por %p157, %p158
    %p160 = scmp.ne.s32.totalorder %s152, %s154
    %p161 = scmp.eq.s32.totalorder %s18, 1
    %p162 = por %p160, %p161
    %p163 = scmp.ne.s32.totalorder %s154, %s155
    %p164 = scmp.eq.s32.totalorder %s18, 0
    %p165 = por %p163, %p164
    %p166 = scmp.ne.s32.totalorder %s154, %s155
    %p167 = scmp.eq.s32.totalorder %s19, 1
    %p168 = por %p166, %p167
    %p170 = scmp.ne.s32.totalorder %s155, %s169
    %p171 = scmp.eq.s32.totalorder %s19, 0
    %p172 = por %p170, %p171
    %s173 = ssub.s32 %s13, %s20
    %p174 = scmp.eq.s32.totalorder %s173, 0
    %s176 = sadd.s32 %s175, 1
    %s177 = scalar_select %p174, %s175, %s176
    %p180 = pneg %p174
    %p181 = scmp.eq.s32.totalorder %s13, 1
    %p182 = por %p180, %p181
    %p183 = scmp.ne.s32.totalorder %s175, %s178
    %p184 = scmp.eq.s32.totalorder %s13, 0
    %p185 = por %p183, %p184
    %p186 = scmp.ne.s32.totalorder %s175, %s178
    %p187 = scmp.eq.s32.totalorder %s18, 1
    %p188 = por %p186, %p187
    %p189 = scmp.ne.s32.totalorder %s178, %s179
    %p190 = scmp.eq.s32.totalorder %s18, 0
    %p191 = por %p189, %p190
    %p192 = scmp.ne.s32.totalorder %s178, %s179
    %p193 = scmp.eq.s32.totalorder %s19, 1
    %p194 = por %p192, %p193
    %p196 = scmp.ne.s32.totalorder %s179, %s195
    %p197 = scmp.eq.s32.totalorder %s19, 0
    %p198 = por %p196, %p197
    %p199 = scmp.le.s32.totalorder 1, %s13
    %p200 = scmp.lt.s32.totalorder %s13, 3
    %p201 = pnand %p199, %p200
    %p202 = pneg %p201
    // Predicated region
    $region9: #{edge_attr_predictor_forward.9} parent=5 // pred_check
      _
    $region10: #{edge_attr_predictor_forward.9} parent=5 // pred_check_branch
      %204 = sbr.rel (%p201) target = $region12
    $region11: #{edge_attr_predictor_forward.9} parent=5 // pred_region
      %s205 = ssub.s32 %s13, 1
      // Predicated region
      $region13: #{edge_attr_predictor_forward.9} parent=11 // pred_check
        %p206 = pneg %p60
      $region14: #{edge_attr_predictor_forward.9} parent=11 // pred_check_branch
        %208 = sbr.rel (%p206) target = $region16
      $region15: #{edge_attr_predictor_forward.9} parent=11 // pred_region
        _
      $region16: #{edge_attr_predictor_forward.9} parent=11 // pred_fallthru
        _
      // Predicated region
      $region17: #{edge_attr_predictor_forward.9} parent=11 // pred_check
        %p209 = pneg %p81
      $region18: #{edge_attr_predictor_forward.9} parent=11 // pred_check_branch
        %211 = sbr.rel (%p209) target = $region20
      $region19: #{edge_attr_predictor_forward.9} parent=11 // pred_region
        _
      $region20: #{edge_attr_predictor_forward.9} parent=11 // pred_fallthru
        _
      // Predicated region
      $region21: #{edge_attr_predictor_forward.9} parent=11 // pred_check
        %p212 = pneg %p102
      $region22: #{edge_attr_predictor_forward.9} parent=11 // pred_check_branch
        %214 = sbr.rel (%p212) target = $region24
      $region23: #{edge_attr_predictor_forward.9} parent=11 // pred_region
        _
      $region24: #{edge_attr_predictor_forward.9} parent=11 // pred_fallthru
        _
      // Predicated region
      $region25: #{edge_attr_predictor_forward.9} parent=11 // pred_check
        %p215 = pneg %p123
      $region26: #{edge_attr_predictor_forward.9} parent=11 // pred_check_branch
        %217 = sbr.rel (%p215) target = $region28
      $region27: #{edge_attr_predictor_forward.9} parent=11 // pred_region
        _
      $region28: #{edge_attr_predictor_forward.9} parent=11 // pred_fallthru
        _
      // Predicated region
      $region29: #{edge_attr_predictor_forward.9} parent=11 // pred_check
        %p218 = pneg %p144
      $region30: #{edge_attr_predictor_forward.9} parent=11 // pred_check_branch
        %220 = sbr.rel (%p218) target = $region32
      $region31: #{edge_attr_predictor_forward.9} parent=11 // pred_region
        _
      $region32: #{edge_attr_predictor_forward.9} parent=11 // pred_fallthru
        _
      // Predicated region
      $region33: #{edge_attr_predictor_forward.9} parent=11 // pred_check
        %p221 = pneg %p165
      $region34: #{edge_attr_predictor_forward.9} parent=11 // pred_check_branch
        %223 = sbr.rel (%p221) target = $region36
      $region35: #{edge_attr_predictor_forward.9} parent=11 // pred_region
        _
      $region36: #{edge_attr_predictor_forward.9} parent=11 // pred_fallthru
        _
    $region12: #{edge_attr_predictor_forward.9} parent=5 // pred_fallthru
      _
    %p224 = scmp.lt.s32.totalorder %s13, 2
    // Predicated region
    $region37: #{edge_attr_predictor_forward.9} parent=5 // pred_check
      %p225 = pneg %p224
    $region38: #{edge_attr_predictor_forward.9} parent=5 // pred_check_branch
      %227 = sbr.rel (%p225) target = $region40
    $region39: #{edge_attr_predictor_forward.9} parent=5 // pred_region
      // Predicated region
      $region41: #{edge_attr_predictor_forward.9} parent=39 // pred_check
        %p228 = pneg %p33
      $region42: #{edge_attr_predictor_forward.9} parent=39 // pred_check_branch
        %230 = sbr.rel (%p228) target = $region44
      $region43: #{edge_attr_predictor_forward.9} parent=39 // pred_region
        %s231 = smul.u32 32, %s13
        %p232 = scmp.lt.s32.totalorder %s231, 63
        %s233 = scalar_select %p232, %s231, 63
        %s234 = smul.addr %s233, 2
        %s235 = smul.addr %s234, 4
        %s236 = scalar_lea.vmem %s0, %s235
        %s237 = smul.u32 32, %s13
      $region44: #{edge_attr_predictor_forward.9} parent=39 // pred_fallthru
        _
    $region40: #{edge_attr_predictor_forward.9} parent=5 // pred_fallthru
      _
    %p238 = scmp.le.s32.totalorder 1, %s13
    %p239 = scmp.lt.s32.totalorder %s13, 3
    %p240 = pnand %p238, %p239
    %p241 = pneg %p240
    // Predicated region
    $region45: #{edge_attr_predictor_forward.9} parent=5 // pred_check
      _
    $region46: #{edge_attr_predictor_forward.9} parent=5 // pred_check_branch
      %243 = sbr.rel (%p240) target = $region48
    $region47: #{edge_attr_predictor_forward.9} parent=5 // pred_region
      %s244 = ssub.s32 %s13, 1
      %s245 = smul.u32 32, %s18
      %p246 = scmp.lt.s32.totalorder %s245, 63
      %s247 = scalar_select %p246, %s245, 63
      %s248 = smul.addr %s247, 2
      %s249 = smul.addr %s248, 4
      %s250 = scalar_lea.vmem %s0, %s249
      %p251 = pneg %p39
      %p252 = pneg %p36
      %p253 = pneg %p60
      %p254 = pneg %p57
      %p255 = pneg %p81
      %p256 = pneg %p78
      %p257 = pneg %p102
      %p258 = pneg %p99
      %p259 = pneg %p123
      %p260 = pneg %p120
      %p261 = pneg %p144
      %p262 = pneg %p141
      %p263 = pneg %p165
      %p264 = pneg %p162
      %p265 = pneg %p191
      %p266 = pneg %p188
      %s267 = smul.u32 32, %s18
      %p268 = scmp.lt.s32.totalorder %s267, 63
      %s269 = scalar_select %p268, %s267, 63
      %s270 = smul.addr %s269, 8
      %s271 = scalar_lea.vmem %s7, %s270
      %s272 = smul.u32 32, %s18
      %p273 = scmp.lt.s32.totalorder %s272, 63
      %s274 = scalar_select %p273, %s272, 63
      %s275 = smul.addr %s274, 2
      %s276 = smul.addr %s275, 4
      %s277 = scalar_lea.vmem %s0, %s276
      %s278 = smul.u32 32, %s18
      %s279 = smul.u32 32, %s18
      %p280 = scmp.lt.s32.totalorder %s279, 63
      %s281 = scalar_select %p280, %s279, 63
      %s282 = smul.addr %s281, 8
      %s283 = scalar_lea.vmem %s7, %s282
      %s284 = smul.u32 32, %s18
      %v285 = vld [vmem:[%s277] sm:$0xff]
      %v286 = vld [vmem:[%s277 + $0x8] sm:$0xff]
      %v287 = vld [vmem:[%s277 + $0x10] sm:$0xff]
      %v288 = vld [vmem:[%s277 + $0x18] sm:$0xff]
      %v289 = vld [vmem:[%s277 + $0x20] sm:$0xff]
      %v290 = vld [vmem:[%s277 + $0x28] sm:$0xff]
      %v291 = vld [vmem:[%s277 + $0x30] sm:$0xff]
      %v292 = vld [vmem:[%s277 + $0x38] sm:$0xff]
      %v293 = vld [vmem:[%s277 + $0x40] sm:$0xff]
      %v294 = vld [vmem:[%s277 + $0x48] sm:$0xff]
      %v295 = vld [vmem:[%s277 + $0x50] sm:$0xff]
      %v296 = vld [vmem:[%s277 + $0x58] sm:$0xff]
      %v297 = vld [vmem:[%s277 + $0x60] sm:$0xff]
      %v298 = vld [vmem:[%s277 + $0x68] sm:$0xff]
      %v299 = vld [vmem:[%s277 + $0x70] sm:$0xff]
      %v300 = vld [vmem:[%s277 + $0x78] sm:$0xff]
      %v301 = vld [vmem:[%s277 + $0x80] sm:$0xff]
      %v302 = vld [vmem:[%s277 + $0x88] sm:$0xff]
      %v303 = vld [vmem:[%s277 + $0x90] sm:$0xff]
      %v304 = vld [vmem:[%s277 + $0x98] sm:$0xff]
      %v305 = vld [vmem:[%s277 + $0xa0] sm:$0xff]
      %v306 = vld [vmem:[%s277 + $0xa8] sm:$0xff]
      %v307 = vld [vmem:[%s277 + $0xb0] sm:$0xff]
      %v308 = vld [vmem:[%s277 + $0xb8] sm:$0xff]
      %v309 = vld [vmem:[%s277 + $0xc0] sm:$0xff]
      %v310 = vld [vmem:[%s277 + $0xc8] sm:$0xff]
      %v311 = vld [vmem:[%s277 + $0xd0] sm:$0xff]
      %v312 = vld [vmem:[%s277 + $0xd8] sm:$0xff]
      %v313 = vld [vmem:[%s277 + $0xe0] sm:$0xff]
      %v314 = vld [vmem:[%s277 + $0xe8] sm:$0xff]
      %v315 = vld [vmem:[%s277 + $0xf0] sm:$0xff]
      %v316 = vld [vmem:[%s277 + $0xf8] sm:$0xff]
      %v317 = vld [vmem:[%s1] sm:$0xf]
      %v318 = vld [vmem:[%s1 + $0x4] sm:$0xf]
      %v319 = vld [vmem:[%s1 + $0x8] sm:$0xf]
      %v320 = vld [vmem:[%s1 + $0xc] sm:$0xf]
      %v321 = vld [vmem:[%s1 + $0x10] sm:$0xf]
      %v322 = vld [vmem:[%s1 + $0x14] sm:$0xf]
      %v323 = vld [vmem:[%s1 + $0x18] sm:$0xf]
      %v324 = vld [vmem:[%s1 + $0x1c] sm:$0xf]
      %v325 = vld [vmem:[%s1 + $0x20] sm:$0xf]
      %v326 = vld [vmem:[%s1 + $0x24] sm:$0xf]
      %v327 = vld [vmem:[%s1 + $0x28] sm:$0xf]
      %v328 = vld [vmem:[%s1 + $0x2c] sm:$0xf]
      %v329 = vld [vmem:[%s1 + $0x30] sm:$0xf]
      %v330 = vld [vmem:[%s1 + $0x34] sm:$0xf]
      %v331 = vld [vmem:[%s1 + $0x38] sm:$0xf]
      %v332 = vld [vmem:[%s1 + $0x3c] sm:$0xf]
      %v333 = vld [vmem:[%s1 + $0x40] sm:$0xf]
      %v334 = vld [vmem:[%s1 + $0x44] sm:$0xf]
      %v335 = vld [vmem:[%s1 + $0x48] sm:$0xf]
      %v336 = vld [vmem:[%s1 + $0x4c] sm:$0xf]
      %v337 = vld [vmem:[%s1 + $0x50] sm:$0xf]
      %v338 = vld [vmem:[%s1 + $0x54] sm:$0xf]
      %v339 = vld [vmem:[%s1 + $0x58] sm:$0xf]
      %v340 = vld [vmem:[%s1 + $0x5c] sm:$0xf]
      %v341 = vld [vmem:[%s1 + $0x60] sm:$0xf]
      %v342 = vld [vmem:[%s1 + $0x64] sm:$0xf]
      %v343 = vld [vmem:[%s1 + $0x68] sm:$0xf]
      %v344 = vld [vmem:[%s1 + $0x6c] sm:$0xf]
      %v345 = vld [vmem:[%s1 + $0x70] sm:$0xf]
      %v346 = vld [vmem:[%s1 + $0x74] sm:$0xf]
      %v347 = vld [vmem:[%s1 + $0x78] sm:$0xf]
      %v348 = vld [vmem:[%s1 + $0x7c] sm:$0xf]
      %v349 = vld [vmem:[%s2] sm:$0x1]
      %v351 = vperm.slane %v349, 0
      %v385 = vunpack.c.l.b16 %v285
      %v386 = vunpack.c.h.b16 %v285
      %v387 = vunpack.c.l.b16 %v286
      %v388 = vunpack.c.h.b16 %v286
      %v389 = vunpack.c.l.b16 %v287
      %v390 = vunpack.c.h.b16 %v287
      %v391 = vunpack.c.l.b16 %v288
      %v392 = vunpack.c.h.b16 %v288
      %v393 = vunpack.c.l.b16 %v289
      %v394 = vunpack.c.h.b16 %v289
      %v395 = vunpack.c.l.b16 %v290
      %v396 = vunpack.c.h.b16 %v290
      %v397 = vunpack.c.l.b16 %v291
      %v398 = vunpack.c.h.b16 %v291
      %v399 = vunpack.c.l.b16 %v292
      %v400 = vunpack.c.h.b16 %v292
      %v401 = vunpack.c.l.b16 %v293
      %v402 = vunpack.c.h.b16 %v293
      %v403 = vunpack.c.l.b16 %v294
      %v404 = vunpack.c.h.b16 %v294
      %v405 = vunpack.c.l.b16 %v295
      %v406 = vunpack.c.h.b16 %v295
      %v407 = vunpack.c.l.b16 %v296
      %v408 = vunpack.c.h.b16 %v296
      %v409 = vunpack.c.l.b16 %v297
      %v410 = vunpack.c.h.b16 %v297
      %v411 = vunpack.c.l.b16 %v298
      %v412 = vunpack.c.h.b16 %v298
      %v413 = vunpack.c.l.b16 %v299
      %v414 = vunpack.c.h.b16 %v299
      %v415 = vunpack.c.l.b16 %v300
      %v416 = vunpack.c.h.b16 %v300
      %v417 = vunpack.c.l.b16 %v301
      %v418 = vunpack.c.h.b16 %v301
      %v419 = vunpack.c.l.b16 %v302
      %v420 = vunpack.c.h.b16 %v302
      %v421 = vunpack.c.l.b16 %v303
      %v422 = vunpack.c.h.b16 %v303
      %v423 = vunpack.c.l.b16 %v304
      %v424 = vunpack.c.h.b16 %v304
      %v425 = vunpack.c.l.b16 %v305
      %v426 = vunpack.c.h.b16 %v305
      %v427 = vunpack.c.l.b16 %v306
      %v428 = vunpack.c.h.b16 %v306
      %v429 = vunpack.c.l.b16 %v307
      %v430 = vunpack.c.h.b16 %v307
      %v431 = vunpack.c.l.b16 %v308
      %v432 = vunpack.c.h.b16 %v308
      %v433 = vunpack.c.l.b16 %v309
      %v434 = vunpack.c.h.b16 %v309
      %v435 = vunpack.c.l.b16 %v310
      %v436 = vunpack.c.h.b16 %v310
      %v437 = vunpack.c.l.b16 %v311
      %v438 = vunpack.c.h.b16 %v311
      %v439 = vunpack.c.l.b16 %v312
      %v440 = vunpack.c.h.b16 %v312
      %v441 = vunpack.c.l.b16 %v313
      %v442 = vunpack.c.h.b16 %v313
      %v443 = vunpack.c.l.b16 %v314
      %v444 = vunpack.c.h.b16 %v314
      %v445 = vunpack.c.l.b16 %v315
      %v446 = vunpack.c.h.b16 %v315
      %v447 = vunpack.c.l.b16 %v316
      %v448 = vunpack.c.h.b16 %v316
      %v449 = vpack.c.b16 %v387, %v385
      %v450 = vpack.c.b16 %v388, %v386
      %v451 = vpack.c.b16 %v391, %v389
      %v452 = vpack.c.b16 %v392, %v390
      %v453 = vpack.c.b16 %v395, %v393
      %v454 = vpack.c.b16 %v396, %v394
      %v455 = vpack.c.b16 %v399, %v397
      %v456 = vpack.c.b16 %v400, %v398
      %v457 = vpack.c.b16 %v403, %v401
      %v458 = vpack.c.b16 %v404, %v402
      %v459 = vpack.c.b16 %v407, %v405
      %v460 = vpack.c.b16 %v408, %v406
      %v461 = vpack.c.b16 %v411, %v409
      %v462 = vpack.c.b16 %v412, %v410
      %v463 = vpack.c.b16 %v415, %v413
      %v464 = vpack.c.b16 %v416, %v414
      %v465 = vpack.c.b16 %v419, %v417
      %v466 = vpack.c.b16 %v420, %v418
      %v467 = vpack.c.b16 %v423, %v421
      %v468 = vpack.c.b16 %v424, %v422
      %v469 = vpack.c.b16 %v427, %v425
      %v470 = vpack.c.b16 %v428, %v426
      %v471 = vpack.c.b16 %v431, %v429
      %v472 = vpack.c.b16 %v432, %v430
      %v473 = vpack.c.b16 %v435, %v433
      %v474 = vpack.c.b16 %v436, %v434
      %v475 = vpack.c.b16 %v439, %v437
      %v476 = vpack.c.b16 %v440, %v438
      %v477 = vpack.c.b16 %v443, %v441
      %v478 = vpack.c.b16 %v444, %v442
      %v479 = vpack.c.b16 %v447, %v445
      %v480 = vpack.c.b16 %v448, %v446
      %v545 = vunpack.c.l.b16 %v317
      %v546 = vunpack.c.l.b16 %v318
      %v547 = vunpack.c.l.b16 %v319
      %v548 = vunpack.c.l.b16 %v320
      %v549 = vunpack.c.l.b16 %v321
      %v550 = vunpack.c.l.b16 %v322
      %v551 = vunpack.c.l.b16 %v323
      %v552 = vunpack.c.l.b16 %v324
      %v553 = vunpack.c.l.b16 %v325
      %v554 = vunpack.c.l.b16 %v326
      %v555 = vunpack.c.l.b16 %v327
      %v556 = vunpack.c.l.b16 %v328
      %v557 = vunpack.c.l.b16 %v329
      %v558 = vunpack.c.l.b16 %v330
      %v559 = vunpack.c.l.b16 %v331
      %v560 = vunpack.c.l.b16 %v332
      %v561 = vunpack.c.l.b16 %v333
      %v562 = vunpack.c.l.b16 %v334
      %v563 = vunpack.c.l.b16 %v335
      %v564 = vunpack.c.l.b16 %v336
      %v565 = vunpack.c.l.b16 %v337
      %v566 = vunpack.c.l.b16 %v338
      %v567 = vunpack.c.l.b16 %v339
      %v568 = vunpack.c.l.b16 %v340
      %v569 = vunpack.c.l.b16 %v341
      %v570 = vunpack.c.l.b16 %v342
      %v571 = vunpack.c.l.b16 %v343
      %v572 = vunpack.c.l.b16 %v344
      %v573 = vunpack.c.l.b16 %v345
      %v574 = vunpack.c.l.b16 %v346
      %v575 = vunpack.c.l.b16 %v347
      %v576 = vunpack.c.l.b16 %v348
      %v577 = vpack.c.b16 %v546, %v545
      %v578 = vpack.c.b16 %v548, %v547
      %v579 = vpack.c.b16 %v550, %v549
      %v580 = vpack.c.b16 %v552, %v551
      %v581 = vpack.c.b16 %v554, %v553
      %v582 = vpack.c.b16 %v556, %v555
      %v583 = vpack.c.b16 %v558, %v557
      %v584 = vpack.c.b16 %v560, %v559
      %v585 = vpack.c.b16 %v562, %v561
      %v586 = vpack.c.b16 %v564, %v563
      %v587 = vpack.c.b16 %v566, %v565
      %v588 = vpack.c.b16 %v568, %v567
      %v589 = vpack.c.b16 %v570, %v569
      %v590 = vpack.c.b16 %v572, %v571
      %v591 = vpack.c.b16 %v574, %v573
      %v592 = vpack.c.b16 %v576, %v575
      %609 = vmatpush.bf16.msra.mxu0 %v584
      %610 = vmatpush.bf16.msra.mxu0 %v583
      %611 = vmatpush.bf16.msra.mxu0 %v582
      %612 = vmatpush.bf16.msra.mxu0 %v581
      %613 = vmatpush.bf16.msra.mxu0 %v580
      %614 = vmatpush.bf16.msra.mxu0 %v579
      %615 = vmatpush.bf16.msra.mxu0 %v578
      %616 = vmatpush.bf16.msra.mxu0 %v577
      %617 = vmatmul.bf16.gmra.mxu0 %v449
      %v618 = vpop.f32.mrf.mxu0
      %v619 = vadd.f32 %v351, %v618
      %v620 = vpop.f32.mrf.mxu0
      %v621 = vadd.f32 %v351, %v620
      %622 = vmatmul.bf16.gmra.mxu0 %v451
      %v623 = vpop.f32.mrf.mxu0
      %v624 = vadd.f32 %v351, %v623
      %v625 = vpop.f32.mrf.mxu0
      %v626 = vadd.f32 %v351, %v625
      %627 = vmatmul.bf16.gmra.mxu0 %v453
      %v628 = vpop.f32.mrf.mxu0
      %v629 = vadd.f32 %v351, %v628
      %v630 = vpop.f32.mrf.mxu0
      %v631 = vadd.f32 %v351, %v630
      %632 = vmatmul.bf16.gmra.mxu0 %v455
      %v633 = vpop.f32.mrf.mxu0
      %v634 = vadd.f32 %v351, %v633
      %v635 = vpop.f32.mrf.mxu0
      %v636 = vadd.f32 %v351, %v635
      %637 = vmatmul.bf16.gmra.mxu0 %v457
      %v638 = vpop.f32.mrf.mxu0
      %v639 = vadd.f32 %v351, %v638
      %v640 = vpop.f32.mrf.mxu0
      %v641 = vadd.f32 %v351, %v640
      %642 = vmatmul.bf16.gmra.mxu0 %v459
      %v643 = vpop.f32.mrf.mxu0
      %v644 = vadd.f32 %v351, %v643
      %v645 = vpop.f32.mrf.mxu0
      %v646 = vadd.f32 %v351, %v645
      %647 = vmatmul.bf16.gmra.mxu0 %v461
      %v648 = vpop.f32.mrf.mxu0
      %v649 = vadd.f32 %v351, %v648
      %v650 = vpop.f32.mrf.mxu0
      %v651 = vadd.f32 %v351, %v650
      %652 = vmatmul.bf16.gmra.mxu0 %v463
      %v653 = vpop.f32.mrf.mxu0
      %v654 = vadd.f32 %v351, %v653
      %v655 = vpop.f32.mrf.mxu0
      %v656 = vadd.f32 %v351, %v655
      %657 = vmatmul.bf16.gmra.mxu0 %v465
      %v658 = vpop.f32.mrf.mxu0
      %v659 = vadd.f32 %v351, %v658
      %v660 = vpop.f32.mrf.mxu0
      %v661 = vadd.f32 %v351, %v660
      %662 = vmatmul.bf16.gmra.mxu0 %v467
      %v663 = vpop.f32.mrf.mxu0
      %v664 = vadd.f32 %v351, %v663
      %v665 = vpop.f32.mrf.mxu0
      %v666 = vadd.f32 %v351, %v665
      %667 = vmatmul.bf16.gmra.mxu0 %v469
      %v668 = vpop.f32.mrf.mxu0
      %v669 = vadd.f32 %v351, %v668
      %v670 = vpop.f32.mrf.mxu0
      %v671 = vadd.f32 %v351, %v670
      %672 = vmatmul.bf16.gmra.mxu0 %v471
      %v673 = vpop.f32.mrf.mxu0
      %v674 = vadd.f32 %v351, %v673
      %v675 = vpop.f32.mrf.mxu0
      %v676 = vadd.f32 %v351, %v675
      %677 = vmatmul.bf16.gmra.mxu0 %v473
      %v678 = vpop.f32.mrf.mxu0
      %v679 = vadd.f32 %v351, %v678
      %v680 = vpop.f32.mrf.mxu0
      %v681 = vadd.f32 %v351, %v680
      %682 = vmatmul.bf16.gmra.mxu0 %v475
      %v683 = vpop.f32.mrf.mxu0
      %v684 = vadd.f32 %v351, %v683
      %v685 = vpop.f32.mrf.mxu0
      %v686 = vadd.f32 %v351, %v685
      %687 = vmatmul.bf16.gmra.mxu0 %v477
      %v688 = vpop.f32.mrf.mxu0
      %v689 = vadd.f32 %v351, %v688
      %v690 = vpop.f32.mrf.mxu0
      %v691 = vadd.f32 %v351, %v690
      %692 = vmatmul.bf16.gmra.mxu0 %v479
      %v693 = vpop.f32.mrf.mxu0
      %v694 = vadd.f32 %v351, %v693
      %v695 = vpop.f32.mrf.mxu0
      %v696 = vadd.f32 %v351, %v695
      %697 = vdwg.mxu0
      %698 = vmatpush.bf16.msra.mxu0 %v592
      %699 = vmatpush.bf16.msra.mxu0 %v591
      %700 = vmatpush.bf16.msra.mxu0 %v590
      %701 = vmatpush.bf16.msra.mxu0 %v589
      %702 = vmatpush.bf16.msra.mxu0 %v588
      %703 = vmatpush.bf16.msra.mxu0 %v587
      %704 = vmatpush.bf16.msra.mxu0 %v586
      %705 = vmatpush.bf16.msra.mxu0 %v585
      %706 = vmatmul.bf16.gmra.mxu0 %v450
      %v707 = vpop.f32.mrf.mxu0
      %v708 = vadd.f32 %v619, %v707
      %v709 = vpop.f32.mrf.mxu0
      %v710 = vadd.f32 %v621, %v709
      %711 = vmatmul.bf16.gmra.mxu0 %v452
      %v712 = vpop.f32.mrf.mxu0
      %v713 = vadd.f32 %v624, %v712
      %v714 = vpop.f32.mrf.mxu0
      %v715 = vadd.f32 %v626, %v714
      %716 = vmatmul.bf16.gmra.mxu0 %v454
      %v717 = vpop.f32.mrf.mxu0
      %v718 = vadd.f32 %v629, %v717
      %v719 = vpop.f32.mrf.mxu0
      %v720 = vadd.f32 %v631, %v719
      %721 = vmatmul.bf16.gmra.mxu0 %v456
      %v722 = vpop.f32.mrf.mxu0
      %v723 = vadd.f32 %v634, %v722
      %v724 = vpop.f32.mrf.mxu0
      %v725 = vadd.f32 %v636, %v724
      %726 = vmatmul.bf16.gmra.mxu0 %v458
      %v727 = vpop.f32.mrf.mxu0
      %v728 = vadd.f32 %v639, %v727
      %v729 = vpop.f32.mrf.mxu0
      %v730 = vadd.f32 %v641, %v729
      %731 = vmatmul.bf16.gmra.mxu0 %v460
      %v732 = vpop.f32.mrf.mxu0
      %v733 = vadd.f32 %v644, %v732
      %v734 = vpop.f32.mrf.mxu0
      %v735 = vadd.f32 %v646, %v734
      %736 = vmatmul.bf16.gmra.mxu0 %v462
      %v737 = vpop.f32.mrf.mxu0
      %v738 = vadd.f32 %v649, %v737
      %v739 = vpop.f32.mrf.mxu0
      %v740 = vadd.f32 %v651, %v739
      %741 = vmatmul.bf16.gmra.mxu0 %v464
      %v742 = vpop.f32.mrf.mxu0
      %v743 = vadd.f32 %v654, %v742
      %v744 = vpop.f32.mrf.mxu0
      %v745 = vadd.f32 %v656, %v744
      %746 = vmatmul.bf16.gmra.mxu0 %v466
      %v747 = vpop.f32.mrf.mxu0
      %v748 = vadd.f32 %v659, %v747
      %v749 = vpop.f32.mrf.mxu0
      %v750 = vadd.f32 %v661, %v749
      %751 = vmatmul.bf16.gmra.mxu0 %v468
      %v752 = vpop.f32.mrf.mxu0
      %v753 = vadd.f32 %v664, %v752
      %v754 = vpop.f32.mrf.mxu0
      %v755 = vadd.f32 %v666, %v754
      %756 = vmatmul.bf16.gmra.mxu0 %v470
      %v757 = vpop.f32.mrf.mxu0
      %v758 = vadd.f32 %v669, %v757
      %v759 = vpop.f32.mrf.mxu0
      %v760 = vadd.f32 %v671, %v759
      %761 = vmatmul.bf16.gmra.mxu0 %v472
      %v762 = vpop.f32.mrf.mxu0
      %v763 = vadd.f32 %v674, %v762
      %v764 = vpop.f32.mrf.mxu0
      %v765 = vadd.f32 %v676, %v764
      %766 = vmatmul.bf16.gmra.mxu0 %v474
      %v767 = vpop.f32.mrf.mxu0
      %v768 = vadd.f32 %v679, %v767
      %v769 = vpop.f32.mrf.mxu0
      %v770 = vadd.f32 %v681, %v769
      %771 = vmatmul.bf16.gmra.mxu0 %v476
      %v772 = vpop.f32.mrf.mxu0
      %v773 = vadd.f32 %v684, %v772
      %v774 = vpop.f32.mrf.mxu0
      %v775 = vadd.f32 %v686, %v774
      %776 = vmatmul.bf16.gmra.mxu0 %v478
      %v777 = vpop.f32.mrf.mxu0
      %v778 = vadd.f32 %v689, %v777
      %v779 = vpop.f32.mrf.mxu0
      %v780 = vadd.f32 %v691, %v779
      %781 = vmatmul.bf16.gmra.mxu0 %v480
      %v782 = vpop.f32.mrf.mxu0
      %v783 = vadd.f32 %v694, %v782
      %v784 = vpop.f32.mrf.mxu0
      %v785 = vadd.f32 %v696, %v784
      %786 = vdwg.mxu0
      %vm787 = vcmp.gt.f32.partialorder %v708, 0.0
      %vm788 = vcmp.gt.f32.partialorder %v710, 0.0
      %vm789 = vcmp.gt.f32.partialorder %v713, 0.0
      %vm790 = vcmp.gt.f32.partialorder %v715, 0.0
      %vm791 = vcmp.gt.f32.partialorder %v718, 0.0
      %vm792 = vcmp.gt.f32.partialorder %v720, 0.0
      %vm793 = vcmp.gt.f32.partialorder %v723, 0.0
      %vm794 = vcmp.gt.f32.partialorder %v725, 0.0
      %vm795 = vcmp.gt.f32.partialorder %v728, 0.0
      %vm796 = vcmp.gt.f32.partialorder %v730, 0.0
      %vm797 = vcmp.gt.f32.partialorder %v733, 0.0
      %vm798 = vcmp.gt.f32.partialorder %v735, 0.0
      %vm799 = vcmp.gt.f32.partialorder %v738, 0.0
      %vm800 = vcmp.gt.f32.partialorder %v740, 0.0
      %vm801 = vcmp.gt.f32.partialorder %v743, 0.0
      %vm802 = vcmp.gt.f32.partialorder %v745, 0.0
      %vm803 = vcmp.gt.f32.partialorder %v748, 0.0
      %vm804 = vcmp.gt.f32.partialorder %v750, 0.0
      %vm805 = vcmp.gt.f32.partialorder %v753, 0.0
      %vm806 = vcmp.gt.f32.partialorder %v755, 0.0
      %vm807 = vcmp.gt.f32.partialorder %v758, 0.0
      %vm808 = vcmp.gt.f32.partialorder %v760, 0.0
      %vm809 = vcmp.gt.f32.partialorder %v763, 0.0
      %vm810 = vcmp.gt.f32.partialorder %v765, 0.0
      %vm811 = vcmp.gt.f32.partialorder %v768, 0.0
      %vm812 = vcmp.gt.f32.partialorder %v770, 0.0
      %vm813 = vcmp.gt.f32.partialorder %v773, 0.0
      %vm814 = vcmp.gt.f32.partialorder %v775, 0.0
      %vm815 = vcmp.gt.f32.partialorder %v778, 0.0
      %vm816 = vcmp.gt.f32.partialorder %v780, 0.0
      %vm817 = vcmp.gt.f32.partialorder %v783, 0.0
      %vm818 = vcmp.gt.f32.partialorder %v785, 0.0
      %v819 = vmul.f32 %v708, 0.1
      %v820 = vmul.f32 %v710, 0.1
      %v821 = vmul.f32 %v713, 0.1
      %v822 = vmul.f32 %v715, 0.1
      %v823 = vmul.f32 %v718, 0.1
      %v824 = vmul.f32 %v720, 0.1
      %v825 = vmul.f32 %v723, 0.1
      %v826 = vmul.f32 %v725, 0.1
      %v827 = vmul.f32 %v728, 0.1
      %v828 = vmul.f32 %v730, 0.1
      %v829 = vmul.f32 %v733, 0.1
      %v830 = vmul.f32 %v735, 0.1
      %v831 = vmul.f32 %v738, 0.1
      %v832 = vmul.f32 %v740, 0.1
      %v833 = vmul.f32 %v743, 0.1
      %v834 = vmul.f32 %v745, 0.1
      %v835 = vmul.f32 %v748, 0.1
      %v836 = vmul.f32 %v750, 0.1
      %v837 = vmul.f32 %v753, 0.1
      %v838 = vmul.f32 %v755, 0.1
      %v839 = vmul.f32 %v758, 0.1
      %v840 = vmul.f32 %v760, 0.1
      %v841 = vmul.f32 %v763, 0.1
      %v842 = vmul.f32 %v765, 0.1
      %v843 = vmul.f32 %v768, 0.1
      %v844 = vmul.f32 %v770, 0.1
      %v845 = vmul.f32 %v773, 0.1
      %v846 = vmul.f32 %v775, 0.1
      %v847 = vmul.f32 %v778, 0.1
      %v848 = vmul.f32 %v780, 0.1
      %v849 = vmul.f32 %v783, 0.1
      %v850 = vmul.f32 %v785, 0.1
      %v851 = vsel %vm787, %v708, %v819
      %v852 = vsel %vm788, %v710, %v820
      %v853 = vsel %vm789, %v713, %v821
      %v854 = vsel %vm790, %v715, %v822
      %v855 = vsel %vm791, %v718, %v823
      %v856 = vsel %vm792, %v720, %v824
      %v857 = vsel %vm793, %v723, %v825
      %v858 = vsel %vm794, %v725, %v826
      %v859 = vsel %vm795, %v728, %v827
      %v860 = vsel %vm796, %v730, %v828
      %v861 = vsel %vm797, %v733, %v829
      %v862 = vsel %vm798, %v735, %v830
      %v863 = vsel %vm799, %v738, %v831
      %v864 = vsel %vm800, %v740, %v832
      %v865 = vsel %vm801, %v743, %v833
      %v866 = vsel %vm802, %v745, %v834
      %v867 = vsel %vm803, %v748, %v835
      %v868 = vsel %vm804, %v750, %v836
      %v869 = vsel %vm805, %v753, %v837
      %v870 = vsel %vm806, %v755, %v838
      %v871 = vsel %vm807, %v758, %v839
      %v872 = vsel %vm808, %v760, %v840
      %v873 = vsel %vm809, %v763, %v841
      %v874 = vsel %vm810, %v765, %v842
      %v875 = vsel %vm811, %v768, %v843
      %v876 = vsel %vm812, %v770, %v844
      %v877 = vsel %vm813, %v773, %v845
      %v878 = vsel %vm814, %v775, %v846
      %v879 = vsel %vm815, %v778, %v847
      %v880 = vsel %vm816, %v780, %v848
      %v881 = vsel %vm817, %v783, %v849
      %v882 = vsel %vm818, %v785, %v850
      %v883 = vpack.c.bf16 %v852, %v851
      %v884 = vpack.c.bf16 %v854, %v853
      %v885 = vpack.c.bf16 %v856, %v855
      %v886 = vpack.c.bf16 %v858, %v857
      %v887 = vpack.c.bf16 %v860, %v859
      %v888 = vpack.c.bf16 %v862, %v861
      %v889 = vpack.c.bf16 %v864, %v863
      %v890 = vpack.c.bf16 %v866, %v865
      %v891 = vpack.c.bf16 %v868, %v867
      %v892 = vpack.c.bf16 %v870, %v869
      %v893 = vpack.c.bf16 %v872, %v871
      %v894 = vpack.c.bf16 %v874, %v873
      %v895 = vpack.c.bf16 %v876, %v875
      %v896 = vpack.c.bf16 %v878, %v877
      %v897 = vpack.c.bf16 %v880, %v879
      %v898 = vpack.c.bf16 %v882, %v881
      %v899 = vld [vmem:[%s3] sm:$0xf]
      %v900 = vld [vmem:[%s3 + $0x4] sm:$0xf]
      %v901 = vld [vmem:[%s3 + $0x8] sm:$0xf]
      %v902 = vld [vmem:[%s3 + $0xc] sm:$0xf]
      %v903 = vld [vmem:[%s3 + $0x10] sm:$0xf]
      %v904 = vld [vmem:[%s3 + $0x14] sm:$0xf]
      %v905 = vld [vmem:[%s3 + $0x18] sm:$0xf]
      %v906 = vld [vmem:[%s3 + $0x1c] sm:$0xf]
      %v907 = vld [vmem:[%s3 + $0x20] sm:$0xf]
      %v908 = vld [vmem:[%s3 + $0x24] sm:$0xf]
      %v909 = vld [vmem:[%s3 + $0x28] sm:$0xf]
      %v910 = vld [vmem:[%s3 + $0x2c] sm:$0xf]
      %v911 = vld [vmem:[%s3 + $0x30] sm:$0xf]
      %v912 = vld [vmem:[%s3 + $0x34] sm:$0xf]
      %v913 = vld [vmem:[%s3 + $0x38] sm:$0xf]
      %v914 = vld [vmem:[%s3 + $0x3c] sm:$0xf]
      %v915 = vld [vmem:[%s4] sm:$0x1]
      %v917 = vperm.slane %v915, 0
      %v935 = vunpack.c.l.b16 %v899
      %v936 = vunpack.c.l.b16 %v900
      %v937 = vunpack.c.l.b16 %v901
      %v938 = vunpack.c.l.b16 %v902
      %v939 = vunpack.c.l.b16 %v903
      %v940 = vunpack.c.l.b16 %v904
      %v941 = vunpack.c.l.b16 %v905
      %v942 = vunpack.c.l.b16 %v906
      %v943 = vunpack.c.l.b16 %v907
      %v944 = vunpack.c.l.b16 %v908
      %v945 = vunpack.c.l.b16 %v909
      %v946 = vunpack.c.l.b16 %v910
      %v947 = vunpack.c.l.b16 %v911
      %v948 = vunpack.c.l.b16 %v912
      %v949 = vunpack.c.l.b16 %v913
      %v950 = vunpack.c.l.b16 %v914
      %v951 = vpack.c.b16 %v936, %v935
      %v952 = vpack.c.b16 %v938, %v937
      %v953 = vpack.c.b16 %v940, %v939
      %v954 = vpack.c.b16 %v942, %v941
      %v955 = vpack.c.b16 %v944, %v943
      %v956 = vpack.c.b16 %v946, %v945
      %v957 = vpack.c.b16 %v948, %v947
      %v958 = vpack.c.b16 %v950, %v949
      %967 = vmatpush.bf16.msra.mxu0 %v958
      %968 = vmatpush.bf16.msra.mxu0 %v957
      %969 = vmatpush.bf16.msra.mxu0 %v956
      %970 = vmatpush.bf16.msra.mxu0 %v955
      %971 = vmatpush.bf16.msra.mxu0 %v954
      %972 = vmatpush.bf16.msra.mxu0 %v953
      %973 = vmatpush.bf16.msra.mxu0 %v952
      %974 = vmatpush.bf16.msra.mxu0 %v951
      %975 = vmatmul.bf16.gmra.mxu0 %v883
      %v976 = vpop.f32.mrf.mxu0
      %v977 = vadd.f32 %v917, %v976
      %v978 = vpop.f32.mrf.mxu0
      %v979 = vadd.f32 %v917, %v978
      %980 = vmatmul.bf16.gmra.mxu0 %v884
      %v981 = vpop.f32.mrf.mxu0
      %v982 = vadd.f32 %v917, %v981
      %v983 = vpop.f32.mrf.mxu0
      %v984 = vadd.f32 %v917, %v983
      %985 = vmatmul.bf16.gmra.mxu0 %v885
      %v986 = vpop.f32.mrf.mxu0
      %v987 = vadd.f32 %v917, %v986
      %v988 = vpop.f32.mrf.mxu0
      %v989 = vadd.f32 %v917, %v988
      %990 = vmatmul.bf16.gmra.mxu0 %v886
      %v991 = vpop.f32.mrf.mxu0
      %v992 = vadd.f32 %v917, %v991
      %v993 = vpop.f32.mrf.mxu0
      %v994 = vadd.f32 %v917, %v993
      %995 = vmatmul.bf16.gmra.mxu0 %v887
      %v996 = vpop.f32.mrf.mxu0
      %v997 = vadd.f32 %v917, %v996
      %v998 = vpop.f32.mrf.mxu0
      %v999 = vadd.f32 %v917, %v998
      %1000 = vmatmul.bf16.gmra.mxu0 %v888
      %v1001 = vpop.f32.mrf.mxu0
      %v1002 = vadd.f32 %v917, %v1001
      %v1003 = vpop.f32.mrf.mxu0
      %v1004 = vadd.f32 %v917, %v1003
      %1005 = vmatmul.bf16.gmra.mxu0 %v889
      %v1006 = vpop.f32.mrf.mxu0
      %v1007 = vadd.f32 %v917, %v1006
      %v1008 = vpop.f32.mrf.mxu0
      %v1009 = vadd.f32 %v917, %v1008
      %1010 = vmatmul.bf16.gmra.mxu0 %v890
      %v1011 = vpop.f32.mrf.mxu0
      %v1012 = vadd.f32 %v917, %v1011
      %v1013 = vpop.f32.mrf.mxu0
      %v1014 = vadd.f32 %v917, %v1013
      %1015 = vmatmul.bf16.gmra.mxu0 %v891
      %v1016 = vpop.f32.mrf.mxu0
      %v1017 = vadd.f32 %v917, %v1016
      %v1018 = vpop.f32.mrf.mxu0
      %v1019 = vadd.f32 %v917, %v1018
      %1020 = vmatmul.bf16.gmra.mxu0 %v892
      %v1021 = vpop.f32.mrf.mxu0
      %v1022 = vadd.f32 %v917, %v1021
      %v1023 = vpop.f32.mrf.mxu0
      %v1024 = vadd.f32 %v917, %v1023
      %1025 = vmatmul.bf16.gmra.mxu0 %v893
      %v1026 = vpop.f32.mrf.mxu0
      %v1027 = vadd.f32 %v917, %v1026
      %v1028 = vpop.f32.mrf.mxu0
      %v1029 = vadd.f32 %v917, %v1028
      %1030 = vmatmul.bf16.gmra.mxu0 %v894
      %v1031 = vpop.f32.mrf.mxu0
      %v1032 = vadd.f32 %v917, %v1031
      %v1033 = vpop.f32.mrf.mxu0
      %v1034 = vadd.f32 %v917, %v1033
      %1035 = vmatmul.bf16.gmra.mxu0 %v895
      %v1036 = vpop.f32.mrf.mxu0
      %v1037 = vadd.f32 %v917, %v1036
      %v1038 = vpop.f32.mrf.mxu0
      %v1039 = vadd.f32 %v917, %v1038
      %1040 = vmatmul.bf16.gmra.mxu0 %v896
      %v1041 = vpop.f32.mrf.mxu0
      %v1042 = vadd.f32 %v917, %v1041
      %v1043 = vpop.f32.mrf.mxu0
      %v1044 = vadd.f32 %v917, %v1043
      %1045 = vmatmul.bf16.gmra.mxu0 %v897
      %v1046 = vpop.f32.mrf.mxu0
      %v1047 = vadd.f32 %v917, %v1046
      %v1048 = vpop.f32.mrf.mxu0
      %v1049 = vadd.f32 %v917, %v1048
      %1050 = vmatmul.bf16.gmra.mxu0 %v898
      %v1051 = vpop.f32.mrf.mxu0
      %v1052 = vadd.f32 %v917, %v1051
      %v1053 = vpop.f32.mrf.mxu0
      %v1054 = vadd.f32 %v917, %v1053
      %1055 = vdwg.mxu0
      %vm1056 = vcmp.gt.f32.partialorder %v977, 0.0
      %vm1057 = vcmp.gt.f32.partialorder %v979, 0.0
      %vm1058 = vcmp.gt.f32.partialorder %v982, 0.0
      %vm1059 = vcmp.gt.f32.partialorder %v984, 0.0
      %vm1060 = vcmp.gt.f32.partialorder %v987, 0.0
      %vm1061 = vcmp.gt.f32.partialorder %v989, 0.0
      %vm1062 = vcmp.gt.f32.partialorder %v992, 0.0
      %vm1063 = vcmp.gt.f32.partialorder %v994, 0.0
      %vm1064 = vcmp.gt.f32.partialorder %v997, 0.0
      %vm1065 = vcmp.gt.f32.partialorder %v999, 0.0
      %vm1066 = vcmp.gt.f32.partialorder %v1002, 0.0
      %vm1067 = vcmp.gt.f32.partialorder %v1004, 0.0
      %vm1068 = vcmp.gt.f32.partialorder %v1007, 0.0
      %vm1069 = vcmp.gt.f32.partialorder %v1009, 0.0
      %vm1070 = vcmp.gt.f32.partialorder %v1012, 0.0
      %vm1071 = vcmp.gt.f32.partialorder %v1014, 0.0
      %vm1072 = vcmp.gt.f32.partialorder %v1017, 0.0
      %vm1073 = vcmp.gt.f32.partialorder %v1019, 0.0
      %vm1074 = vcmp.gt.f32.partialorder %v1022, 0.0
      %vm1075 = vcmp.gt.f32.partialorder %v1024, 0.0
      %vm1076 = vcmp.gt.f32.partialorder %v1027, 0.0
      %vm1077 = vcmp.gt.f32.partialorder %v1029, 0.0
      %vm1078 = vcmp.gt.f32.partialorder %v1032, 0.0
      %vm1079 = vcmp.gt.f32.partialorder %v1034, 0.0
      %vm1080 = vcmp.gt.f32.partialorder %v1037, 0.0
      %vm1081 = vcmp.gt.f32.partialorder %v1039, 0.0
      %vm1082 = vcmp.gt.f32.partialorder %v1042, 0.0
      %vm1083 = vcmp.gt.f32.partialorder %v1044, 0.0
      %vm1084 = vcmp.gt.f32.partialorder %v1047, 0.0
      %vm1085 = vcmp.gt.f32.partialorder %v1049, 0.0
      %vm1086 = vcmp.gt.f32.partialorder %v1052, 0.0
      %vm1087 = vcmp.gt.f32.partialorder %v1054, 0.0
      %v1088 = vmul.f32 %v977, 0.1
      %v1089 = vmul.f32 %v979, 0.1
      %v1090 = vmul.f32 %v982, 0.1
      %v1091 = vmul.f32 %v984, 0.1
      %v1092 = vmul.f32 %v987, 0.1
      %v1093 = vmul.f32 %v989, 0.1
      %v1094 = vmul.f32 %v992, 0.1
      %v1095 = vmul.f32 %v994, 0.1
      %v1096 = vmul.f32 %v997, 0.1
      %v1097 = vmul.f32 %v999, 0.1
      %v1098 = vmul.f32 %v1002, 0.1
      %v1099 = vmul.f32 %v1004, 0.1
      %v1100 = vmul.f32 %v1007, 0.1
      %v1101 = vmul.f32 %v1009, 0.1
      %v1102 = vmul.f32 %v1012, 0.1
      %v1103 = vmul.f32 %v1014, 0.1
      %v1104 = vmul.f32 %v1017, 0.1
      %v1105 = vmul.f32 %v1019, 0.1
      %v1106 = vmul.f32 %v1022, 0.1
      %v1107 = vmul.f32 %v1024, 0.1
      %v1108 = vmul.f32 %v1027, 0.1
      %v1109 = vmul.f32 %v1029, 0.1
      %v1110 = vmul.f32 %v1032, 0.1
      %v1111 = vmul.f32 %v1034, 0.1
      %v1112 = vmul.f32 %v1037, 0.1
      %v1113 = vmul.f32 %v1039, 0.1
      %v1114 = vmul.f32 %v1042, 0.1
      %v1115 = vmul.f32 %v1044, 0.1
      %v1116 = vmul.f32 %v1047, 0.1
      %v1117 = vmul.f32 %v1049, 0.1
      %v1118 = vmul.f32 %v1052, 0.1
      %v1119 = vmul.f32 %v1054, 0.1
      %v1120 = vsel %vm1056, %v977, %v1088
      %v1121 = vsel %vm1057, %v979, %v1089
      %v1122 = vsel %vm1058, %v982, %v1090
      %v1123 = vsel %vm1059, %v984, %v1091
      %v1124 = vsel %vm1060, %v987, %v1092
      %v1125 = vsel %vm1061, %v989, %v1093
      %v1126 = vsel %vm1062, %v992, %v1094
      %v1127 = vsel %vm1063, %v994, %v1095
      %v1128 = vsel %vm1064, %v997, %v1096
      %v1129 = vsel %vm1065, %v999, %v1097
      %v1130 = vsel %vm1066, %v1002, %v1098
      %v1131 = vsel %vm1067, %v1004, %v1099
      %v1132 = vsel %vm1068, %v1007, %v1100
      %v1133 = vsel %vm1069, %v1009, %v1101
      %v1134 = vsel %vm1070, %v1012, %v1102
      %v1135 = vsel %vm1071, %v1014, %v1103
      %v1136 = vsel %vm1072, %v1017, %v1104
      %v1137 = vsel %vm1073, %v1019, %v1105
      %v1138 = vsel %vm1074, %v1022, %v1106
      %v1139 = vsel %vm1075, %v1024, %v1107
      %v1140 = vsel %vm1076, %v1027, %v1108
      %v1141 = vsel %vm1077, %v1029, %v1109
      %v1142 = vsel %vm1078, %v1032, %v1110
      %v1143 = vsel %vm1079, %v1034, %v1111
      %v1144 = vsel %vm1080, %v1037, %v1112
      %v1145 = vsel %vm1081, %v1039, %v1113
      %v1146 = vsel %vm1082, %v1042, %v1114
      %v1147 = vsel %vm1083, %v1044, %v1115
      %v1148 = vsel %vm1084, %v1047, %v1116
      %v1149 = vsel %vm1085, %v1049, %v1117
      %v1150 = vsel %vm1086, %v1052, %v1118
      %v1151 = vsel %vm1087, %v1054, %v1119
      %v1152 = vpack.c.bf16 %v1121, %v1120
      %v1153 = vpack.c.bf16 %v1123, %v1122
      %v1154 = vpack.c.bf16 %v1125, %v1124
      %v1155 = vpack.c.bf16 %v1127, %v1126
      %v1156 = vpack.c.bf16 %v1129, %v1128
      %v1157 = vpack.c.bf16 %v1131, %v1130
      %v1158 = vpack.c.bf16 %v1133, %v1132
      %v1159 = vpack.c.bf16 %v1135, %v1134
      %v1160 = vpack.c.bf16 %v1137, %v1136
      %v1161 = vpack.c.bf16 %v1139, %v1138
      %v1162 = vpack.c.bf16 %v1141, %v1140
      %v1163 = vpack.c.bf16 %v1143, %v1142
      %v1164 = vpack.c.bf16 %v1145, %v1144
      %v1165 = vpack.c.bf16 %v1147, %v1146
      %v1166 = vpack.c.bf16 %v1149, %v1148
      %v1167 = vpack.c.bf16 %v1151, %v1150
      %v1168 = vld [vmem:[%s5] sm:$0xf]
      %v1169 = vld [vmem:[%s5 + $0x4] sm:$0xf]
      %v1170 = vld [vmem:[%s5 + $0x8] sm:$0xf]
      %v1171 = vld [vmem:[%s5 + $0xc] sm:$0xf]
      %v1172 = vld [vmem:[%s5 + $0x10] sm:$0xf]
      %v1173 = vld [vmem:[%s5 + $0x14] sm:$0xf]
      %v1174 = vld [vmem:[%s5 + $0x18] sm:$0xf]
      %v1175 = vld [vmem:[%s5 + $0x1c] sm:$0xf]
      %v1176 = vld [vmem:[%s5 + $0x20] sm:$0xf]
      %v1177 = vld [vmem:[%s5 + $0x24] sm:$0xf]
      %v1178 = vld [vmem:[%s5 + $0x28] sm:$0xf]
      %v1179 = vld [vmem:[%s5 + $0x2c] sm:$0xf]
      %v1180 = vld [vmem:[%s5 + $0x30] sm:$0xf]
      %v1181 = vld [vmem:[%s5 + $0x34] sm:$0xf]
      %v1182 = vld [vmem:[%s5 + $0x38] sm:$0xf]
      %v1183 = vld [vmem:[%s5 + $0x3c] sm:$0xf]
      %v1184 = vld [vmem:[%s6] sm:$0x1]
      %v1186 = vperm.slane %v1184, 0
      %v1204 = vunpack.c.l.b16 %v1168
      %v1205 = vunpack.c.l.b16 %v1169
      %v1206 = vunpack.c.l.b16 %v1170
      %v1207 = vunpack.c.l.b16 %v1171
      %v1208 = vunpack.c.l.b16 %v1172
      %v1209 = vunpack.c.l.b16 %v1173
      %v1210 = vunpack.c.l.b16 %v1174
      %v1211 = vunpack.c.l.b16 %v1175
      %v1212 = vunpack.c.l.b16 %v1176
      %v1213 = vunpack.c.l.b16 %v1177
      %v1214 = vunpack.c.l.b16 %v1178
      %v1215 = vunpack.c.l.b16 %v1179
      %v1216 = vunpack.c.l.b16 %v1180
      %v1217 = vunpack.c.l.b16 %v1181
      %v1218 = vunpack.c.l.b16 %v1182
      %v1219 = vunpack.c.l.b16 %v1183
      %v1220 = vpack.c.b16 %v1205, %v1204
      %v1221 = vpack.c.b16 %v1207, %v1206
      %v1222 = vpack.c.b16 %v1209, %v1208
      %v1223 = vpack.c.b16 %v1211, %v1210
      %v1224 = vpack.c.b16 %v1213, %v1212
      %v1225 = vpack.c.b16 %v1215, %v1214
      %v1226 = vpack.c.b16 %v1217, %v1216
      %v1227 = vpack.c.b16 %v1219, %v1218
      %1236 = vmatpush.bf16.msra.mxu0 %v1227
      %1237 = vmatpush.bf16.msra.mxu0 %v1226
      %1238 = vmatpush.bf16.msra.mxu0 %v1225
      %1239 = vmatpush.bf16.msra.mxu0 %v1224
      %1240 = vmatpush.bf16.msra.mxu0 %v1223
      %1241 = vmatpush.bf16.msra.mxu0 %v1222
      %1242 = vmatpush.bf16.msra.mxu0 %v1221
      %1243 = vmatpush.bf16.msra.mxu0 %v1220
      %1244 = vmatmul.bf16.gmra.mxu0 %v1152
      %v1245 = vpop.f32.mrf.mxu0
      %v1246 = vadd.f32 %v1186, %v1245
      %v1247 = vpop.f32.mrf.mxu0
      %v1248 = vadd.f32 %v1186, %v1247
      %1249 = vmatmul.bf16.gmra.mxu0 %v1153
      %v1250 = vpop.f32.mrf.mxu0
      %v1251 = vadd.f32 %v1186, %v1250
      %v1252 = vpop.f32.mrf.mxu0
      %v1253 = vadd.f32 %v1186, %v1252
      %1254 = vmatmul.bf16.gmra.mxu0 %v1154
      %v1255 = vpop.f32.mrf.mxu0
      %v1256 = vadd.f32 %v1186, %v1255
      %v1257 = vpop.f32.mrf.mxu0
      %v1258 = vadd.f32 %v1186, %v1257
      %1259 = vmatmul.bf16.gmra.mxu0 %v1155
      %v1260 = vpop.f32.mrf.mxu0
      %v1261 = vadd.f32 %v1186, %v1260
      %v1262 = vpop.f32.mrf.mxu0
      %v1263 = vadd.f32 %v1186, %v1262
      %1264 = vmatmul.bf16.gmra.mxu0 %v1156
      %v1265 = vpop.f32.mrf.mxu0
      %v1266 = vadd.f32 %v1186, %v1265
      %v1267 = vpop.f32.mrf.mxu0
      %v1268 = vadd.f32 %v1186, %v1267
      %1269 = vmatmul.bf16.gmra.mxu0 %v1157
      %v1270 = vpop.f32.mrf.mxu0
      %v1271 = vadd.f32 %v1186, %v1270
      %v1272 = vpop.f32.mrf.mxu0
      %v1273 = vadd.f32 %v1186, %v1272
      %1274 = vmatmul.bf16.gmra.mxu0 %v1158
      %v1275 = vpop.f32.mrf.mxu0
      %v1276 = vadd.f32 %v1186, %v1275
      %v1277 = vpop.f32.mrf.mxu0
      %v1278 = vadd.f32 %v1186, %v1277
      %1279 = vmatmul.bf16.gmra.mxu0 %v1159
      %v1280 = vpop.f32.mrf.mxu0
      %v1281 = vadd.f32 %v1186, %v1280
      %v1282 = vpop.f32.mrf.mxu0
      %v1283 = vadd.f32 %v1186, %v1282
      %1284 = vmatmul.bf16.gmra.mxu0 %v1160
      %v1285 = vpop.f32.mrf.mxu0
      %v1286 = vadd.f32 %v1186, %v1285
      %v1287 = vpop.f32.mrf.mxu0
      %v1288 = vadd.f32 %v1186, %v1287
      %1289 = vmatmul.bf16.gmra.mxu0 %v1161
      %v1290 = vpop.f32.mrf.mxu0
      %v1291 = vadd.f32 %v1186, %v1290
      %v1292 = vpop.f32.mrf.mxu0
      %v1293 = vadd.f32 %v1186, %v1292
      %1294 = vmatmul.bf16.gmra.mxu0 %v1162
      %v1295 = vpop.f32.mrf.mxu0
      %v1296 = vadd.f32 %v1186, %v1295
      %v1297 = vpop.f32.mrf.mxu0
      %v1298 = vadd.f32 %v1186, %v1297
      %1299 = vmatmul.bf16.gmra.mxu0 %v1163
      %v1300 = vpop.f32.mrf.mxu0
      %v1301 = vadd.f32 %v1186, %v1300
      %v1302 = vpop.f32.mrf.mxu0
      %v1303 = vadd.f32 %v1186, %v1302
      %1304 = vmatmul.bf16.gmra.mxu0 %v1164
      %v1305 = vpop.f32.mrf.mxu0
      %v1306 = vadd.f32 %v1186, %v1305
      %v1307 = vpop.f32.mrf.mxu0
      %v1308 = vadd.f32 %v1186, %v1307
      %1309 = vmatmul.bf16.gmra.mxu0 %v1165
      %v1310 = vpop.f32.mrf.mxu0
      %v1311 = vadd.f32 %v1186, %v1310
      %v1312 = vpop.f32.mrf.mxu0
      %v1313 = vadd.f32 %v1186, %v1312
      %1314 = vmatmul.bf16.gmra.mxu0 %v1166
      %v1315 = vpop.f32.mrf.mxu0
      %v1316 = vadd.f32 %v1186, %v1315
      %v1317 = vpop.f32.mrf.mxu0
      %v1318 = vadd.f32 %v1186, %v1317
      %1319 = vmatmul.bf16.gmra.mxu0 %v1167
      %v1320 = vpop.f32.mrf.mxu0
      %v1321 = vadd.f32 %v1186, %v1320
      %v1322 = vpop.f32.mrf.mxu0
      %v1323 = vadd.f32 %v1186, %v1322
      %1324 = vdwg.mxu0
      %1325 = vst [vmem:[%s283] sm:$0xff] %v1246
      %1326 = vst [vmem:[%s283 + $0x8] sm:$0xff] %v1248
      %1327 = vst [vmem:[%s283 + $0x10] sm:$0xff] %v1251
      %1328 = vst [vmem:[%s283 + $0x18] sm:$0xff] %v1253
      %1329 = vst [vmem:[%s283 + $0x20] sm:$0xff] %v1256
      %1330 = vst [vmem:[%s283 + $0x28] sm:$0xff] %v1258
      %1331 = vst [vmem:[%s283 + $0x30] sm:$0xff] %v1261
      %1332 = vst [vmem:[%s283 + $0x38] sm:$0xff] %v1263
      %1333 = vst [vmem:[%s283 + $0x40] sm:$0xff] %v1266
      %1334 = vst [vmem:[%s283 + $0x48] sm:$0xff] %v1268
      %1335 = vst [vmem:[%s283 + $0x50] sm:$0xff] %v1271
      %1336 = vst [vmem:[%s283 + $0x58] sm:$0xff] %v1273
      %1337 = vst [vmem:[%s283 + $0x60] sm:$0xff] %v1276
      %1338 = vst [vmem:[%s283 + $0x68] sm:$0xff] %v1278
      %1339 = vst [vmem:[%s283 + $0x70] sm:$0xff] %v1281
      %1340 = vst [vmem:[%s283 + $0x78] sm:$0xff] %v1283
      %1341 = vst [vmem:[%s283 + $0x80] sm:$0xff] %v1286
      %1342 = vst [vmem:[%s283 + $0x88] sm:$0xff] %v1288
      %1343 = vst [vmem:[%s283 + $0x90] sm:$0xff] %v1291
      %1344 = vst [vmem:[%s283 + $0x98] sm:$0xff] %v1293
      %1345 = vst [vmem:[%s283 + $0xa0] sm:$0xff] %v1296
      %1346 = vst [vmem:[%s283 + $0xa8] sm:$0xff] %v1298
      %1347 = vst [vmem:[%s283 + $0xb0] sm:$0xff] %v1301
      %1348 = vst [vmem:[%s283 + $0xb8] sm:$0xff] %v1303
      %1349 = vst [vmem:[%s283 + $0xc0] sm:$0xff] %v1306
      %1350 = vst [vmem:[%s283 + $0xc8] sm:$0xff] %v1308
      %1351 = vst [vmem:[%s283 + $0xd0] sm:$0xff] %v1311
      %1352 = vst [vmem:[%s283 + $0xd8] sm:$0xff] %v1313
      %1353 = vst [vmem:[%s283 + $0xe0] sm:$0xff] %v1316
      %1354 = vst [vmem:[%s283 + $0xe8] sm:$0xff] %v1318
      %1355 = vst [vmem:[%s283 + $0xf0] sm:$0xff] %v1321
      %1356 = vst [vmem:[%s283 + $0xf8] sm:$0xff] %v1323
      %s1357 = smul.u32 32, %s18
      %p1358 = scmp.lt.s32.totalorder %s1357, 63
      %s1359 = scalar_select %p1358, %s1357, 63
      %s1360 = smul.addr %s1359, 8
      %s1361 = scalar_lea.vmem %s7, %s1360
      // Predicated region
      $region49: #{edge_attr_predictor_forward.9} parent=47 // pred_check
        %p1362 = pneg %p188
      $region50: #{edge_attr_predictor_forward.9} parent=47 // pred_check_branch
        %1364 = sbr.rel (%p1362) target = $region52
      $region51: #{edge_attr_predictor_forward.9} parent=47 // pred_region
        %s1365 = smul.u32 32, %s18
      $region52: #{edge_attr_predictor_forward.9} parent=47 // pred_fallthru
        _
    $region48: #{edge_attr_predictor_forward.9} parent=5 // pred_fallthru
      _
    %p1366 = scmp.le.s32.totalorder 2, %s13
    // Predicated region
    $region53: #{edge_attr_predictor_forward.9} parent=5 // pred_check
      %p1367 = pneg %p1366
    $region54: #{edge_attr_predictor_forward.9} parent=5 // pred_check_branch
      %1369 = sbr.rel (%p1367) target = $region56
    $region55: #{edge_attr_predictor_forward.9} parent=5 // pred_region
      %s1370 = ssub.s32 %s13, 2
      // Predicated region
      $region57: #{edge_attr_predictor_forward.9} parent=55 // pred_check
        %p1371 = pneg %p194
      $region58: #{edge_attr_predictor_forward.9} parent=55 // pred_check_branch
        %1373 = sbr.rel (%p1371) target = $region60
      $region59: #{edge_attr_predictor_forward.9} parent=55 // pred_region
        %s1374 = smul.u32 32, %s19
        %p1375 = scmp.lt.s32.totalorder %s1374, 63
        %s1376 = scalar_select %p1375, %s1374, 63
        %s1377 = smul.addr %s1376, 8
        %s1378 = scalar_lea.vmem %s7, %s1377
      $region60: #{edge_attr_predictor_forward.9} parent=55 // pred_fallthru
        _
    $region56: #{edge_attr_predictor_forward.9} parent=5 // pred_fallthru
      _
  $region6: #{edge_attr_predictor_forward.9} parent=0 // loop_footer
    %s17 = sadd.s32 1, %s13
  $region7: #{edge_attr_predictor_forward.9} parent=0 // loop_footer_branch
    %12 = sbr.rel target = $region3
  $region8: #{edge_attr_predictor_forward.9} parent=0 // loop_exit
    _

</llo_original>
